<compile_context>
chip_gen: v7x
topology: tpu7x:2x2x1
jax: 0.10.0
libtpu: 0.0.40
codegen_flags: <defaults>
</compile_context>

<pallas_src>
import jax
import jax.numpy as jnp
from jax import lax
from jax.experimental import pallas as pl
from jax.experimental.pallas import tpu as pltpu

EPS = 1e-6       # vnn EPS
BN_EPS = 1e-5    # nn.BatchNorm1d default eps


def _complex_rot_kernel(x_hbm, w_ref, a_ref, out_ref, xv, sem):
    """x_hbm  : [B, C, 3, N] f32 in HBM (memory_space=ANY; gathered by strided DMA)
       w_ref  : [4, 2C, C]  f32 zero-padded stack of [W1f;W1d],[W2f;W2d],[W3f;W3d],[WR]
       a_ref  : [3*B*N, 3*B] f32 averaging matrix (column d*B+b averages coord d / sample b)
       out_ref: [3, 3*B]    f32, out[o, d*B+b] = rot[b, o, d]
       xv     : VMEM scratch [C, 3*B*N]  (lane-dense working copy of x)
       sem    : DMA semaphores (3, B)."""
    f32 = jnp.float32
    B, C, _, N = x_hbm.shape
    BN = B * N
    c2 = C // 2

    # ---- gather x straight from HBM into the lane-dense [C, 3*B*N] layout -----------
    # one strided DMA per (coordinate, sample) slab; issue all, then wait all (overlap).
    copies = []
    for di in range(3):
        for bi in range(B):
            cp = pltpu.make_async_copy(
                x_hbm.at[bi, :, di, :],                         # [C, N] strided HBM slab
                xv.at[:, pl.ds((di * B + bi) * N, N)],          # lane-aligned destination
                sem.at[di, bi])
            cp.start()
            copies.append(cp)
    for cp in copies:
        cp.wait()

    def sum3(a):   # fold the 3 vector coordinates (128-aligned lane slices of [*, L])
        return a[:, 0:BN] + a[:, BN:2 * BN] + a[:, 2 * BN:3 * BN]

    def vn_layer(h, w, cout):
        # fused VNLinear (feat + dir) over all 3 coordinates: one MXU matmul
        o = jnp.dot(w, h, preferred_element_type=f32)           # [2*cout, L]
        p = o[:cout, :]
        d = o[cout:2 * cout, :]
        # squared terms once, at full sublane width, on the packed matmul output
        sq = o * o                                              # [2*cout, L]
        nsq = sum3(sq[:cout, :])                                # |p|^2   [cout, B*N]
        dsq = sum3(sq[cout:2 * cout, :])                        # |d|^2
        pdot = sum3(p * d)                                      # <p, d>  (pre-BN)
        # VNBatchNorm(dim=4): BatchNorm1d over vector norms, training-mode batch stats
        # (biased variance), gamma=1 / beta=0.  Single-pass stats: the two reductions
        # are independent and can overlap on the XLUs.
        norm = jnp.sqrt(nsq) + EPS
        norm2 = norm * norm
        mean = jnp.mean(norm, axis=1, keepdims=True)
        mean2 = jnp.mean(norm2, axis=1, keepdims=True)
        var = mean2 - mean * mean
        # (norm - mean) / sqrt(var + eps) / norm   fused into one exact rsqrt (reuses norm2)
        scale = (norm - mean) * lax.rsqrt((var + BN_EPS) * norm2)
        # VN leaky ReLU with negative_slope == 0, applied to the BN-scaled features:
        #   q = p*scale ;  out = q - min(<q,d>, 0) / (|d|^2 + eps) * d ;  <q,d> = scale*<p,d>
        coef = jnp.minimum(pdot * scale, 0.0) * pl.reciprocal(dsq + EPS, approx=True)
        # NOTE(v5e): the concat re-materializes [cout, L]; writing the slabs into a
        # reused VMEM scratch (or carrying 3 slabs into the next matmul) is a
        # measured-wash alternative per the review - keep the simplest form.
        return jnp.concatenate(
            [p[:, i * BN:(i + 1) * BN] * scale - coef * d[:, i * BN:(i + 1) * BN]
             for i in range(3)], axis=-1)                       # [cout, L]

    h = vn_layer(xv[...], w_ref[0], C)                # linear1: C   -> C
    h = vn_layer(h, w_ref[1][:C, :C], c2)             # linear2: C   -> C/2
    h = vn_layer(h, w_ref[2][:C, :c2], c2)            # linear3: C/2 -> C/2

    # linearR + per-sample mean, batched: per-(coord, sample) means are one MXU matmul
    # against the precomputed averaging matrix, then wR.  out[o, d*B+b] = rot[b, o, d].
    wr = w_ref[3][:3, :c2]                                         # [3, c2]
    hbar = jnp.dot(h, a_ref[...], preferred_element_type=f32)      # [c2, 3*B]
    out_ref[...] = jnp.dot(wr, hbar, preferred_element_type=f32)   # [3, 3*B]


def _pack_weights(params, C):
    """Stack the 7 weight matrices into one zero-padded [4, 2C, C] array (one DMA)."""
    rows, cols = 2 * C, C

    def pad(w):
        w = w.astype(jnp.float32)
        return jnp.pad(w, ((0, rows - w.shape[0]), (0, cols - w.shape[1])))

    w1 = jnp.concatenate([params["w1_feat"], params["w1_dir"]], axis=0)  # [2C, C]
    w2 = jnp.concatenate([params["w2_feat"], params["w2_dir"]], axis=0)  # [C, C]
    w3 = jnp.concatenate([params["w3_feat"], params["w3_dir"]], axis=0)  # [C, C/2]
    return jnp.stack([pad(w1), pad(w2), pad(w3), pad(params["wR"])])     # [4, 2C, C]


def complex_rot_forward(x, params):
    """x: [B, C, 3, N] float32 -> rot_mat [B, 3, 3] float32."""
    B, C, three, N = x.shape
    assert three == 3 and C % 2 == 0
    # Lane-alignment guard: coordinate slices / DMA destination windows are N-strided.
    assert N % 128 == 0, "N (samples per cloud) must be a multiple of 128 lanes"
    L = 3 * B * N

    wpack = _pack_weights(params, C)
    # Averaging matrix for the batched epilogue: column d*B+b averages the N lanes of
    # coordinate d / sample b (1/N folded in).
    avg = jnp.kron(jnp.eye(3 * B, dtype=jnp.float32),
                   jnp.full((N, 1), 1.0 / N, dtype=jnp.float32))         # [L, 3*B]

    # Scoped-VMEM budget sized from the live set (x slab + packed layer-1 tensors +
    # lane-padded averaging matrix + packed weights), with headroom; guard the gridless
    # single-block design well below the v7x physical cap (64 MiB).
    lane = 128
    live_bytes = 4 * (C * L + 3 * (2 * C) * L + L * lane + 4 * (2 * C) * lane)
    assert live_bytes <= (24 << 20), (
        "B*N too large for the single-VMEM-block kernel; see chunked-grid TODO")
    vmem_limit = int(min(max(8 * live_bytes, 32 << 20), 64 << 20))

    vmem = pl.BlockSpec(memory_space=pltpu.MemorySpace.VMEM)
    out = pl.pallas_call(
        _complex_rot_kernel,
        out_shape=jax.ShapeDtypeStruct((3, 3 * B), jnp.float32),
        in_specs=[pl.BlockSpec(memory_space=pl.ANY),   # x stays in HBM; kernel DMAs slabs
                  vmem, vmem],
        out_specs=vmem,
        scratch_shapes=[pltpu.VMEM((C, L), jnp.float32),
                        pltpu.SemaphoreType.DMA((3, B))],
        compiler_params=pltpu.CompilerParams(vmem_limit_bytes=vmem_limit),
    )(x.astype(jnp.float32), wpack, avg)
    # out[o, d*B + b] -> rot[b, o, d]
    return out.reshape(3, 3, B).transpose(2, 0, 1)


def complex_rot_reference(x, params):
    """Pure-JAX reference mirroring the PyTorch module."""
    NEG_SLOPE = 0.0

    def vn_linear(h, w):                      # h: [B, Ci, 3, N], w: [Co, Ci]
        return jnp.einsum("oi,bidn->bodn", w, h)

    def vn_bn(p):
        norm = jnp.sqrt(jnp.sum(p * p, axis=2)) + EPS            # [B, C, N]
        mean = jnp.mean(norm, axis=(0, 2), keepdims=True)
        var = jnp.mean((norm - mean) ** 2, axis=(0, 2), keepdims=True)
        norm_bn = (norm - mean) / jnp.sqrt(var + BN_EPS)
        return p / norm[:, :, None, :] * norm_bn[:, :, None, :]

    def vn_linear_leaky(h, wf, wd):
        p = vn_bn(vn_linear(h, wf))
        d = vn_linear(h, wd)
        dot = jnp.sum(p * d, axis=2, keepdims=True)
        dsq = jnp.sum(d * d, axis=2, keepdims=True)
        mask = (dot >= 0).astype(p.dtype)
        return NEG_SLOPE * p + (1.0 - NEG_SLOPE) * (
            mask * p + (1.0 - mask) * (p - dot / (dsq + EPS) * d)
        )

    h = vn_linear_leaky(x, params["w1_feat"], params["w1_dir"])
    h = vn_linear_leaky(h, params["w2_feat"], params["w2_dir"])
    h = vn_linear_leaky(h, params["w3_feat"], params["w3_dir"])
    R = vn_linear(h, params["wR"])            # [B, 3, 3, N]
    return jnp.mean(R, axis=-1)               # [B, 3, 3]


if __name__ == "__main__":
    B, C, N = 2, 8, 128                       # in_ch = 8, N_samples = 128
    key = jax.random.PRNGKey(0)
    keys = jax.random.split(key, 8)

    def linear_init(k, out_c, in_c):          # nn.Linear default: U(-1/sqrt(fan_in), ...)
        bound = 1.0 / (in_c ** 0.5)
        return jax.random.uniform(k, (out_c, in_c), jnp.float32, -bound, bound)

    params = {
        "w1_feat": linear_init(keys[0], C, C),
        "w1_dir":  linear_init(keys[1], C, C),
        "w2_feat": linear_init(keys[2], C // 2, C),
        "w2_dir":  linear_init(keys[3], C // 2, C),
        "w3_feat": linear_init(keys[4], C // 2, C // 2),
        "w3_dir":  linear_init(keys[5], C // 2, C // 2),
        "wR":      linear_init(keys[6], 3, C // 2),
    }
    x = jax.random.normal(keys[7], (B, C, 3, N), jnp.float32)

    fwd = jax.jit(complex_rot_forward)
    rot = jax.block_until_ready(fwd(x, params))
    ref = complex_rot_reference(x, params)

    assert rot.shape == (B, 3, 3)
    assert jnp.allclose(rot, ref, atol=1e-3, rtol=1e-3), (rot, ref)
    print("KERNEL_OK")
</pallas_src>

<mosaic_0001>
module attributes {stable_mosaic.version = 11 : i64} {
  func.func @_complex_rot_kernel(%arg0: memref<2x8x3x128xf32, #tpu.memory_space<any>>, %arg1: memref<4x16x8xf32, #tpu.memory_space<vmem>>, %arg2: memref<768x6xf32, #tpu.memory_space<vmem>>, %arg3: memref<3x6xf32, #tpu.memory_space<vmem>>, %arg4: memref<8x768xf32, #tpu.memory_space<vmem>>, %arg5: memref<3x2x!tpu.dma_semaphore, #tpu.memory_space<semaphore_mem>>) attributes {dimension_semantics = [], scalar_prefetch = 0 : i64, scratch_operands = 2 : i64, tpu.core_type = #tpu.core_type<tc>} {
    %c0_i32 = arith.constant 0 : i32
    %c0_i32_0 = arith.constant 0 : i32
    %c0_i32_1 = arith.constant 0 : i32
    %c0_i32_2 = arith.constant 0 : i32
    %c0_i32_3 = arith.constant 0 : i32
    %c0_i32_4 = arith.constant 0 : i32
    %0 = tpu.memref_slice %arg0[%c0_i32, %c0_i32_3, %c0_i32_0, %c0_i32_4] : memref<2x8x3x128xf32, #tpu.memory_space<any>> -> memref<1x8x1x128xf32, #tpu.memory_space<any>>
    %1 = tpu.memref_squeeze %0 : memref<1x8x1x128xf32, #tpu.memory_space<any>> -> memref<8x128xf32, #tpu.memory_space<any>>
    %c0_i32_5 = arith.constant 0 : i32
    %c0_i32_6 = arith.constant 0 : i32
    %2 = tpu.memref_slice %arg4[%c0_i32_5, %c0_i32_6] : memref<8x768xf32, #tpu.memory_space<vmem>> -> memref<8x128xf32, #tpu.memory_space<vmem>>
    %3 = tpu.memref_slice %arg5[%c0_i32_1, %c0_i32_2] : memref<3x2x!tpu.dma_semaphore, #tpu.memory_space<semaphore_mem>> -> memref<1x1x!tpu.dma_semaphore, #tpu.memory_space<semaphore_mem>>
    %4 = tpu.memref_squeeze %3 : memref<1x1x!tpu.dma_semaphore, #tpu.memory_space<semaphore_mem>> -> memref<!tpu.dma_semaphore, #tpu.memory_space<semaphore_mem>>
    tpu.enqueue_dma source(%1 : memref<8x128xf32, #tpu.memory_space<any>>) target(%2 : memref<8x128xf32, #tpu.memory_space<vmem>>) target_semaphore(%4 : memref<!tpu.dma_semaphore, #tpu.memory_space<semaphore_mem>>)
    %c1_i32 = arith.constant 1 : i32
    %c0_i32_7 = arith.constant 0 : i32
    %c0_i32_8 = arith.constant 0 : i32
    %c1_i32_9 = arith.constant 1 : i32
    %c0_i32_10 = arith.constant 0 : i32
    %c0_i32_11 = arith.constant 0 : i32
    %5 = tpu.memref_slice %arg0[%c1_i32, %c0_i32_10, %c0_i32_7, %c0_i32_11] : memref<2x8x3x128xf32, #tpu.memory_space<any>> -> memref<1x8x1x128xf32, #tpu.memory_space<any>>
    %6 = tpu.memref_squeeze %5 : memref<1x8x1x128xf32, #tpu.memory_space<any>> -> memref<8x128xf32, #tpu.memory_space<any>>
    %c0_i32_12 = arith.constant 0 : i32
    %c128_i32 = arith.constant 128 : i32
    %7 = tpu.memref_slice %arg4[%c0_i32_12, %c128_i32] : memref<8x768xf32, #tpu.memory_space<vmem>> -> memref<8x128xf32, #tpu.memory_space<vmem>>
    %8 = tpu.memref_slice %arg5[%c0_i32_8, %c1_i32_9] : memref<3x2x!tpu.dma_semaphore, #tpu.memory_space<semaphore_mem>> -> memref<1x1x!tpu.dma_semaphore, #tpu.memory_space<semaphore_mem>>
    %9 = tpu.memref_squeeze %8 : memref<1x1x!tpu.dma_semaphore, #tpu.memory_space<semaphore_mem>> -> memref<!tpu.dma_semaphore, #tpu.memory_space<semaphore_mem>>
    tpu.enqueue_dma source(%6 : memref<8x128xf32, #tpu.memory_space<any>>) target(%7 : memref<8x128xf32, #tpu.memory_space<vmem>>) target_semaphore(%9 : memref<!tpu.dma_semaphore, #tpu.memory_space<semaphore_mem>>)
    %c0_i32_13 = arith.constant 0 : i32
    %c1_i32_14 = arith.constant 1 : i32
    %c1_i32_15 = arith.constant 1 : i32
    %c0_i32_16 = arith.constant 0 : i32
    %c0_i32_17 = arith.constant 0 : i32
    %c0_i32_18 = arith.constant 0 : i32
    %10 = tpu.memref_slice %arg0[%c0_i32_13, %c0_i32_17, %c1_i32_14, %c0_i32_18] : memref<2x8x3x128xf32, #tpu.memory_space<any>> -> memref<1x8x1x128xf32, #tpu.memory_space<any>>
    %11 = tpu.memref_squeeze %10 : memref<1x8x1x128xf32, #tpu.memory_space<any>> -> memref<8x128xf32, #tpu.memory_space<any>>
    %c0_i32_19 = arith.constant 0 : i32
    %c256_i32 = arith.constant 256 : i32
    %12 = tpu.memref_slice %arg4[%c0_i32_19, %c256_i32] : memref<8x768xf32, #tpu.memory_space<vmem>> -> memref<8x128xf32, #tpu.memory_space<vmem>>
    %13 = tpu.memref_slice %arg5[%c1_i32_15, %c0_i32_16] : memref<3x2x!tpu.dma_semaphore, #tpu.memory_space<semaphore_mem>> -> memref<1x1x!tpu.dma_semaphore, #tpu.memory_space<semaphore_mem>>
    %14 = tpu.memref_squeeze %13 : memref<1x1x!tpu.dma_semaphore, #tpu.memory_space<semaphore_mem>> -> memref<!tpu.dma_semaphore, #tpu.memory_space<semaphore_mem>>
    tpu.enqueue_dma source(%11 : memref<8x128xf32, #tpu.memory_space<any>>) target(%12 : memref<8x128xf32, #tpu.memory_space<vmem>>) target_semaphore(%14 : memref<!tpu.dma_semaphore, #tpu.memory_space<semaphore_mem>>)
    %c1_i32_20 = arith.constant 1 : i32
    %c1_i32_21 = arith.constant 1 : i32
    %c1_i32_22 = arith.constant 1 : i32
    %c1_i32_23 = arith.constant 1 : i32
    %c0_i32_24 = arith.constant 0 : i32
    %c0_i32_25 = arith.constant 0 : i32
    %15 = tpu.memref_slice %arg0[%c1_i32_20, %c0_i32_24, %c1_i32_21, %c0_i32_25] : memref<2x8x3x128xf32, #tpu.memory_space<any>> -> memref<1x8x1x128xf32, #tpu.memory_space<any>>
    %16 = tpu.memref_squeeze %15 : memref<1x8x1x128xf32, #tpu.memory_space<any>> -> memref<8x128xf32, #tpu.memory_space<any>>
    %c0_i32_26 = arith.constant 0 : i32
    %c384_i32 = arith.constant 384 : i32
    %17 = tpu.memref_slice %arg4[%c0_i32_26, %c384_i32] : memref<8x768xf32, #tpu.memory_space<vmem>> -> memref<8x128xf32, #tpu.memory_space<vmem>>
    %18 = tpu.memref_slice %arg5[%c1_i32_22, %c1_i32_23] : memref<3x2x!tpu.dma_semaphore, #tpu.memory_space<semaphore_mem>> -> memref<1x1x!tpu.dma_semaphore, #tpu.memory_space<semaphore_mem>>
    %19 = tpu.memref_squeeze %18 : memref<1x1x!tpu.dma_semaphore, #tpu.memory_space<semaphore_mem>> -> memref<!tpu.dma_semaphore, #tpu.memory_space<semaphore_mem>>
    tpu.enqueue_dma source(%16 : memref<8x128xf32, #tpu.memory_space<any>>) target(%17 : memref<8x128xf32, #tpu.memory_space<vmem>>) target_semaphore(%19 : memref<!tpu.dma_semaphore, #tpu.memory_space<semaphore_mem>>)
    %c0_i32_27 = arith.constant 0 : i32
    %c2_i32 = arith.constant 2 : i32
    %c2_i32_28 = arith.constant 2 : i32
    %c0_i32_29 = arith.constant 0 : i32
    %c0_i32_30 = arith.constant 0 : i32
    %c0_i32_31 = arith.constant 0 : i32
    %20 = tpu.memref_slice %arg0[%c0_i32_27, %c0_i32_30, %c2_i32, %c0_i32_31] : memref<2x8x3x128xf32, #tpu.memory_space<any>> -> memref<1x8x1x128xf32, #tpu.memory_space<any>>
    %21 = tpu.memref_squeeze %20 : memref<1x8x1x128xf32, #tpu.memory_space<any>> -> memref<8x128xf32, #tpu.memory_space<any>>
    %c0_i32_32 = arith.constant 0 : i32
    %c512_i32 = arith.constant 512 : i32
    %22 = tpu.memref_slice %arg4[%c0_i32_32, %c512_i32] : memref<8x768xf32, #tpu.memory_space<vmem>> -> memref<8x128xf32, #tpu.memory_space<vmem>>
    %23 = tpu.memref_slice %arg5[%c2_i32_28, %c0_i32_29] : memref<3x2x!tpu.dma_semaphore, #tpu.memory_space<semaphore_mem>> -> memref<1x1x!tpu.dma_semaphore, #tpu.memory_space<semaphore_mem>>
    %24 = tpu.memref_squeeze %23 : memref<1x1x!tpu.dma_semaphore, #tpu.memory_space<semaphore_mem>> -> memref<!tpu.dma_semaphore, #tpu.memory_space<semaphore_mem>>
    tpu.enqueue_dma source(%21 : memref<8x128xf32, #tpu.memory_space<any>>) target(%22 : memref<8x128xf32, #tpu.memory_space<vmem>>) target_semaphore(%24 : memref<!tpu.dma_semaphore, #tpu.memory_space<semaphore_mem>>)
    %c1_i32_33 = arith.constant 1 : i32
    %c2_i32_34 = arith.constant 2 : i32
    %c2_i32_35 = arith.constant 2 : i32
    %c1_i32_36 = arith.constant 1 : i32
    %c0_i32_37 = arith.constant 0 : i32
    %c0_i32_38 = arith.constant 0 : i32
    %25 = tpu.memref_slice %arg0[%c1_i32_33, %c0_i32_37, %c2_i32_34, %c0_i32_38] : memref<2x8x3x128xf32, #tpu.memory_space<any>> -> memref<1x8x1x128xf32, #tpu.memory_space<any>>
    %26 = tpu.memref_squeeze %25 : memref<1x8x1x128xf32, #tpu.memory_space<any>> -> memref<8x128xf32, #tpu.memory_space<any>>
    %c0_i32_39 = arith.constant 0 : i32
    %c640_i32 = arith.constant 640 : i32
    %27 = tpu.memref_slice %arg4[%c0_i32_39, %c640_i32] : memref<8x768xf32, #tpu.memory_space<vmem>> -> memref<8x128xf32, #tpu.memory_space<vmem>>
    %28 = tpu.memref_slice %arg5[%c2_i32_35, %c1_i32_36] : memref<3x2x!tpu.dma_semaphore, #tpu.memory_space<semaphore_mem>> -> memref<1x1x!tpu.dma_semaphore, #tpu.memory_space<semaphore_mem>>
    %29 = tpu.memref_squeeze %28 : memref<1x1x!tpu.dma_semaphore, #tpu.memory_space<semaphore_mem>> -> memref<!tpu.dma_semaphore, #tpu.memory_space<semaphore_mem>>
    tpu.enqueue_dma source(%26 : memref<8x128xf32, #tpu.memory_space<any>>) target(%27 : memref<8x128xf32, #tpu.memory_space<vmem>>) target_semaphore(%29 : memref<!tpu.dma_semaphore, #tpu.memory_space<semaphore_mem>>)
    %c0_i32_40 = arith.constant 0 : i32
    %c0_i32_41 = arith.constant 0 : i32
    %c0_i32_42 = arith.constant 0 : i32
    %c0_i32_43 = arith.constant 0 : i32
    %c0_i32_44 = arith.constant 0 : i32
    %c0_i32_45 = arith.constant 0 : i32
    %30 = tpu.memref_slice %arg0[%c0_i32_40, %c0_i32_44, %c0_i32_41, %c0_i32_45] : memref<2x8x3x128xf32, #tpu.memory_space<any>> -> memref<1x8x1x128xf32, #tpu.memory_space<any>>
    %31 = tpu.memref_squeeze %30 : memref<1x8x1x128xf32, #tpu.memory_space<any>> -> memref<8x128xf32, #tpu.memory_space<any>>
    %c0_i32_46 = arith.constant 0 : i32
    %c0_i32_47 = arith.constant 0 : i32
    %32 = tpu.memref_slice %arg4[%c0_i32_46, %c0_i32_47] : memref<8x768xf32, #tpu.memory_space<vmem>> -> memref<8x128xf32, #tpu.memory_space<vmem>>
    %33 = tpu.memref_slice %arg5[%c0_i32_42, %c0_i32_43] : memref<3x2x!tpu.dma_semaphore, #tpu.memory_space<semaphore_mem>> -> memref<1x1x!tpu.dma_semaphore, #tpu.memory_space<semaphore_mem>>
    %34 = tpu.memref_squeeze %33 : memref<1x1x!tpu.dma_semaphore, #tpu.memory_space<semaphore_mem>> -> memref<!tpu.dma_semaphore, #tpu.memory_space<semaphore_mem>>
    tpu.wait_dma2 semaphore(%34 : memref<!tpu.dma_semaphore, #tpu.memory_space<semaphore_mem>>) src(%31 : memref<8x128xf32, #tpu.memory_space<any>>) dst(%32 : memref<8x128xf32, #tpu.memory_space<vmem>>)
    %c1_i32_48 = arith.constant 1 : i32
    %c0_i32_49 = arith.constant 0 : i32
    %c0_i32_50 = arith.constant 0 : i32
    %c1_i32_51 = arith.constant 1 : i32
    %c0_i32_52 = arith.constant 0 : i32
    %c0_i32_53 = arith.constant 0 : i32
    %35 = tpu.memref_slice %arg0[%c1_i32_48, %c0_i32_52, %c0_i32_49, %c0_i32_53] : memref<2x8x3x128xf32, #tpu.memory_space<any>> -> memref<1x8x1x128xf32, #tpu.memory_space<any>>
    %36 = tpu.memref_squeeze %35 : memref<1x8x1x128xf32, #tpu.memory_space<any>> -> memref<8x128xf32, #tpu.memory_space<any>>
    %c0_i32_54 = arith.constant 0 : i32
    %c128_i32_55 = arith.constant 128 : i32
    %37 = tpu.memref_slice %arg4[%c0_i32_54, %c128_i32_55] : memref<8x768xf32, #tpu.memory_space<vmem>> -> memref<8x128xf32, #tpu.memory_space<vmem>>
    %38 = tpu.memref_slice %arg5[%c0_i32_50, %c1_i32_51] : memref<3x2x!tpu.dma_semaphore, #tpu.memory_space<semaphore_mem>> -> memref<1x1x!tpu.dma_semaphore, #tpu.memory_space<semaphore_mem>>
    %39 = tpu.memref_squeeze %38 : memref<1x1x!tpu.dma_semaphore, #tpu.memory_space<semaphore_mem>> -> memref<!tpu.dma_semaphore, #tpu.memory_space<semaphore_mem>>
    tpu.wait_dma2 semaphore(%39 : memref<!tpu.dma_semaphore, #tpu.memory_space<semaphore_mem>>) src(%36 : memref<8x128xf32, #tpu.memory_space<any>>) dst(%37 : memref<8x128xf32, #tpu.memory_space<vmem>>)
    %c0_i32_56 = arith.constant 0 : i32
    %c1_i32_57 = arith.constant 1 : i32
    %c1_i32_58 = arith.constant 1 : i32
    %c0_i32_59 = arith.constant 0 : i32
    %c0_i32_60 = arith.constant 0 : i32
    %c0_i32_61 = arith.constant 0 : i32
    %40 = tpu.memref_slice %arg0[%c0_i32_56, %c0_i32_60, %c1_i32_57, %c0_i32_61] : memref<2x8x3x128xf32, #tpu.memory_space<any>> -> memref<1x8x1x128xf32, #tpu.memory_space<any>>
    %41 = tpu.memref_squeeze %40 : memref<1x8x1x128xf32, #tpu.memory_space<any>> -> memref<8x128xf32, #tpu.memory_space<any>>
    %c0_i32_62 = arith.constant 0 : i32
    %c256_i32_63 = arith.constant 256 : i32
    %42 = tpu.memref_slice %arg4[%c0_i32_62, %c256_i32_63] : memref<8x768xf32, #tpu.memory_space<vmem>> -> memref<8x128xf32, #tpu.memory_space<vmem>>
    %43 = tpu.memref_slice %arg5[%c1_i32_58, %c0_i32_59] : memref<3x2x!tpu.dma_semaphore, #tpu.memory_space<semaphore_mem>> -> memref<1x1x!tpu.dma_semaphore, #tpu.memory_space<semaphore_mem>>
    %44 = tpu.memref_squeeze %43 : memref<1x1x!tpu.dma_semaphore, #tpu.memory_space<semaphore_mem>> -> memref<!tpu.dma_semaphore, #tpu.memory_space<semaphore_mem>>
    tpu.wait_dma2 semaphore(%44 : memref<!tpu.dma_semaphore, #tpu.memory_space<semaphore_mem>>) src(%41 : memref<8x128xf32, #tpu.memory_space<any>>) dst(%42 : memref<8x128xf32, #tpu.memory_space<vmem>>)
    %c1_i32_64 = arith.constant 1 : i32
    %c1_i32_65 = arith.constant 1 : i32
    %c1_i32_66 = arith.constant 1 : i32
    %c1_i32_67 = arith.constant 1 : i32
    %c0_i32_68 = arith.constant 0 : i32
    %c0_i32_69 = arith.constant 0 : i32
    %45 = tpu.memref_slice %arg0[%c1_i32_64, %c0_i32_68, %c1_i32_65, %c0_i32_69] : memref<2x8x3x128xf32, #tpu.memory_space<any>> -> memref<1x8x1x128xf32, #tpu.memory_space<any>>
    %46 = tpu.memref_squeeze %45 : memref<1x8x1x128xf32, #tpu.memory_space<any>> -> memref<8x128xf32, #tpu.memory_space<any>>
    %c0_i32_70 = arith.constant 0 : i32
    %c384_i32_71 = arith.constant 384 : i32
    %47 = tpu.memref_slice %arg4[%c0_i32_70, %c384_i32_71] : memref<8x768xf32, #tpu.memory_space<vmem>> -> memref<8x128xf32, #tpu.memory_space<vmem>>
    %48 = tpu.memref_slice %arg5[%c1_i32_66, %c1_i32_67] : memref<3x2x!tpu.dma_semaphore, #tpu.memory_space<semaphore_mem>> -> memref<1x1x!tpu.dma_semaphore, #tpu.memory_space<semaphore_mem>>
    %49 = tpu.memref_squeeze %48 : memref<1x1x!tpu.dma_semaphore, #tpu.memory_space<semaphore_mem>> -> memref<!tpu.dma_semaphore, #tpu.memory_space<semaphore_mem>>
    tpu.wait_dma2 semaphore(%49 : memref<!tpu.dma_semaphore, #tpu.memory_space<semaphore_mem>>) src(%46 : memref<8x128xf32, #tpu.memory_space<any>>) dst(%47 : memref<8x128xf32, #tpu.memory_space<vmem>>)
    %c0_i32_72 = arith.constant 0 : i32
    %c2_i32_73 = arith.constant 2 : i32
    %c2_i32_74 = arith.constant 2 : i32
    %c0_i32_75 = arith.constant 0 : i32
    %c0_i32_76 = arith.constant 0 : i32
    %c0_i32_77 = arith.constant 0 : i32
    %50 = tpu.memref_slice %arg0[%c0_i32_72, %c0_i32_76, %c2_i32_73, %c0_i32_77] : memref<2x8x3x128xf32, #tpu.memory_space<any>> -> memref<1x8x1x128xf32, #tpu.memory_space<any>>
    %51 = tpu.memref_squeeze %50 : memref<1x8x1x128xf32, #tpu.memory_space<any>> -> memref<8x128xf32, #tpu.memory_space<any>>
    %c0_i32_78 = arith.constant 0 : i32
    %c512_i32_79 = arith.constant 512 : i32
    %52 = tpu.memref_slice %arg4[%c0_i32_78, %c512_i32_79] : memref<8x768xf32, #tpu.memory_space<vmem>> -> memref<8x128xf32, #tpu.memory_space<vmem>>
    %53 = tpu.memref_slice %arg5[%c2_i32_74, %c0_i32_75] : memref<3x2x!tpu.dma_semaphore, #tpu.memory_space<semaphore_mem>> -> memref<1x1x!tpu.dma_semaphore, #tpu.memory_space<semaphore_mem>>
    %54 = tpu.memref_squeeze %53 : memref<1x1x!tpu.dma_semaphore, #tpu.memory_space<semaphore_mem>> -> memref<!tpu.dma_semaphore, #tpu.memory_space<semaphore_mem>>
    tpu.wait_dma2 semaphore(%54 : memref<!tpu.dma_semaphore, #tpu.memory_space<semaphore_mem>>) src(%51 : memref<8x128xf32, #tpu.memory_space<any>>) dst(%52 : memref<8x128xf32, #tpu.memory_space<vmem>>)
    %c1_i32_80 = arith.constant 1 : i32
    %c2_i32_81 = arith.constant 2 : i32
    %c2_i32_82 = arith.constant 2 : i32
    %c1_i32_83 = arith.constant 1 : i32
    %c0_i32_84 = arith.constant 0 : i32
    %c0_i32_85 = arith.constant 0 : i32
    %55 = tpu.memref_slice %arg0[%c1_i32_80, %c0_i32_84, %c2_i32_81, %c0_i32_85] : memref<2x8x3x128xf32, #tpu.memory_space<any>> -> memref<1x8x1x128xf32, #tpu.memory_space<any>>
    %56 = tpu.memref_squeeze %55 : memref<1x8x1x128xf32, #tpu.memory_space<any>> -> memref<8x128xf32, #tpu.memory_space<any>>
    %c0_i32_86 = arith.constant 0 : i32
    %c640_i32_87 = arith.constant 640 : i32
    %57 = tpu.memref_slice %arg4[%c0_i32_86, %c640_i32_87] : memref<8x768xf32, #tpu.memory_space<vmem>> -> memref<8x128xf32, #tpu.memory_space<vmem>>
    %58 = tpu.memref_slice %arg5[%c2_i32_82, %c1_i32_83] : memref<3x2x!tpu.dma_semaphore, #tpu.memory_space<semaphore_mem>> -> memref<1x1x!tpu.dma_semaphore, #tpu.memory_space<semaphore_mem>>
    %59 = tpu.memref_squeeze %58 : memref<1x1x!tpu.dma_semaphore, #tpu.memory_space<semaphore_mem>> -> memref<!tpu.dma_semaphore, #tpu.memory_space<semaphore_mem>>
    tpu.wait_dma2 semaphore(%59 : memref<!tpu.dma_semaphore, #tpu.memory_space<semaphore_mem>>) src(%56 : memref<8x128xf32, #tpu.memory_space<any>>) dst(%57 : memref<8x128xf32, #tpu.memory_space<vmem>>)
    %c0 = arith.constant 0 : index
    %c0_88 = arith.constant 0 : index
    %60 = vector.load %arg4[%c0, %c0_88] : memref<8x768xf32, #tpu.memory_space<vmem>>, vector<8x768xf32>
    %c0_89 = arith.constant 0 : index
    %c0_90 = arith.constant 0 : index
    %c0_91 = arith.constant 0 : index
    %61 = vector.load %arg1[%c0_89, %c0_90, %c0_91] : memref<4x16x8xf32, #tpu.memory_space<vmem>>, vector<1x16x8xf32>
    %62 = vector.shape_cast %61 : vector<1x16x8xf32> to vector<16x8xf32>
    %cst = arith.constant dense<0.000000e+00> : vector<16x768xf32>
    %63 = tpu.matmul %62, %60, %cst {dimension_numbers = #tpu.dot_dimension_numbers<[1], [0], [0], [1], [0, 0, 1, 1], [], []>} : vector<16x8xf32>, vector<8x768xf32>, vector<16x768xf32> -> vector<16x768xf32>
    %64 = vector.extract_strided_slice %63 {offsets = [0, 0], sizes = [8, 768], strides = [1, 1]} : vector<16x768xf32> to vector<8x768xf32>
    %65 = vector.extract_strided_slice %63 {offsets = [8, 0], sizes = [8, 768], strides = [1, 1]} : vector<16x768xf32> to vector<8x768xf32>
    %66 = arith.mulf %63, %63 : vector<16x768xf32>
    %67 = vector.extract_strided_slice %66 {offsets = [0, 0], sizes = [8, 768], strides = [1, 1]} : vector<16x768xf32> to vector<8x768xf32>
    %68 = vector.extract_strided_slice %67 {offsets = [0, 0], sizes = [8, 256], strides = [1, 1]} : vector<8x768xf32> to vector<8x256xf32>
    %69 = vector.extract_strided_slice %67 {offsets = [0, 256], sizes = [8, 256], strides = [1, 1]} : vector<8x768xf32> to vector<8x256xf32>
    %70 = arith.addf %68, %69 : vector<8x256xf32>
    %71 = vector.extract_strided_slice %67 {offsets = [0, 512], sizes = [8, 256], strides = [1, 1]} : vector<8x768xf32> to vector<8x256xf32>
    %72 = arith.addf %70, %71 : vector<8x256xf32>
    %73 = vector.extract_strided_slice %66 {offsets = [8, 0], sizes = [8, 768], strides = [1, 1]} : vector<16x768xf32> to vector<8x768xf32>
    %74 = vector.extract_strided_slice %73 {offsets = [0, 0], sizes = [8, 256], strides = [1, 1]} : vector<8x768xf32> to vector<8x256xf32>
    %75 = vector.extract_strided_slice %73 {offsets = [0, 256], sizes = [8, 256], strides = [1, 1]} : vector<8x768xf32> to vector<8x256xf32>
    %76 = arith.addf %74, %75 : vector<8x256xf32>
    %77 = vector.extract_strided_slice %73 {offsets = [0, 512], sizes = [8, 256], strides = [1, 1]} : vector<8x768xf32> to vector<8x256xf32>
    %78 = arith.addf %76, %77 : vector<8x256xf32>
    %79 = arith.mulf %64, %65 : vector<8x768xf32>
    %80 = vector.extract_strided_slice %79 {offsets = [0, 0], sizes = [8, 256], strides = [1, 1]} : vector<8x768xf32> to vector<8x256xf32>
    %81 = vector.extract_strided_slice %79 {offsets = [0, 256], sizes = [8, 256], strides = [1, 1]} : vector<8x768xf32> to vector<8x256xf32>
    %82 = arith.addf %80, %81 : vector<8x256xf32>
    %83 = vector.extract_strided_slice %79 {offsets = [0, 512], sizes = [8, 256], strides = [1, 1]} : vector<8x768xf32> to vector<8x256xf32>
    %84 = arith.addf %82, %83 : vector<8x256xf32>
    %85 = math.sqrt %72 : vector<8x256xf32>
    %cst_92 = arith.constant 9.99999997E-7 : f32
    %86 = vector.broadcast %cst_92 : f32 to vector<8x256xf32>
    %87 = arith.addf %85, %86 : vector<8x256xf32>
    %88 = arith.mulf %87, %87 : vector<8x256xf32>
    %cst_93 = arith.constant dense<0.000000e+00> : vector<8xf32>
    %89 = vector.multi_reduction <add>, %87, %cst_93 [1] : vector<8x256xf32> to vector<8xf32>
    %90 = vector.shape_cast %89 : vector<8xf32> to vector<8x1xf32>
    %cst_94 = arith.constant 2.560000e+02 : f32
    %91 = vector.broadcast %cst_94 : f32 to vector<8x1xf32>
    %92 = arith.divf %90, %91 : vector<8x1xf32>
    %cst_95 = arith.constant dense<0.000000e+00> : vector<8xf32>
    %93 = vector.multi_reduction <add>, %88, %cst_95 [1] : vector<8x256xf32> to vector<8xf32>
    %94 = vector.shape_cast %93 : vector<8xf32> to vector<8x1xf32>
    %cst_96 = arith.constant 2.560000e+02 : f32
    %95 = vector.broadcast %cst_96 : f32 to vector<8x1xf32>
    %96 = arith.divf %94, %95 : vector<8x1xf32>
    %97 = arith.mulf %92, %92 : vector<8x1xf32>
    %98 = arith.subf %96, %97 : vector<8x1xf32>
    %99 = vector.broadcast %92 : vector<8x1xf32> to vector<8x256xf32>
    %100 = arith.subf %87, %99 : vector<8x256xf32>
    %cst_97 = arith.constant 9.99999974E-6 : f32
    %101 = vector.broadcast %cst_97 : f32 to vector<8x1xf32>
    %102 = arith.addf %98, %101 : vector<8x1xf32>
    %103 = vector.broadcast %102 : vector<8x1xf32> to vector<8x256xf32>
    %104 = arith.mulf %103, %88 : vector<8x256xf32>
    %105 = math.rsqrt %104 : vector<8x256xf32>
    %106 = arith.mulf %100, %105 : vector<8x256xf32>
    %107 = arith.mulf %84, %106 : vector<8x256xf32>
    %cst_98 = arith.constant 0.000000e+00 : f32
    %108 = vector.broadcast %cst_98 : f32 to vector<8x256xf32>
    %109 = arith.minimumf %107, %108 : vector<8x256xf32>
    %cst_99 = arith.constant 9.99999997E-7 : f32
    %110 = vector.broadcast %cst_99 : f32 to vector<8x256xf32>
    %111 = arith.addf %78, %110 : vector<8x256xf32>
    %112 = tpu.reciprocal %111 {approx = true} : vector<8x256xf32> -> vector<8x256xf32>
    %113 = arith.mulf %109, %112 : vector<8x256xf32>
    %114 = vector.extract_strided_slice %64 {offsets = [0, 0], sizes = [8, 256], strides = [1, 1]} : vector<8x768xf32> to vector<8x256xf32>
    %115 = arith.mulf %114, %106 : vector<8x256xf32>
    %116 = vector.extract_strided_slice %65 {offsets = [0, 0], sizes = [8, 256], strides = [1, 1]} : vector<8x768xf32> to vector<8x256xf32>
    %117 = arith.mulf %113, %116 : vector<8x256xf32>
    %118 = arith.subf %115, %117 : vector<8x256xf32>
    %119 = vector.extract_strided_slice %64 {offsets = [0, 256], sizes = [8, 256], strides = [1, 1]} : vector<8x768xf32> to vector<8x256xf32>
    %120 = arith.mulf %119, %106 : vector<8x256xf32>
    %121 = vector.extract_strided_slice %65 {offsets = [0, 256], sizes = [8, 256], strides = [1, 1]} : vector<8x768xf32> to vector<8x256xf32>
    %122 = arith.mulf %113, %121 : vector<8x256xf32>
    %123 = arith.subf %120, %122 : vector<8x256xf32>
    %124 = vector.extract_strided_slice %64 {offsets = [0, 512], sizes = [8, 256], strides = [1, 1]} : vector<8x768xf32> to vector<8x256xf32>
    %125 = arith.mulf %124, %106 : vector<8x256xf32>
    %126 = vector.extract_strided_slice %65 {offsets = [0, 512], sizes = [8, 256], strides = [1, 1]} : vector<8x768xf32> to vector<8x256xf32>
    %127 = arith.mulf %113, %126 : vector<8x256xf32>
    %128 = arith.subf %125, %127 : vector<8x256xf32>
    %129 = tpu.concatenate %118, %123, %128 in 1 : vector<8x256xf32>, vector<8x256xf32>, vector<8x256xf32> -> vector<8x768xf32>
    %c1 = arith.constant 1 : index
    %c0_100 = arith.constant 0 : index
    %c0_101 = arith.constant 0 : index
    %130 = vector.load %arg1[%c1, %c0_100, %c0_101] : memref<4x16x8xf32, #tpu.memory_space<vmem>>, vector<1x16x8xf32>
    %131 = vector.shape_cast %130 : vector<1x16x8xf32> to vector<16x8xf32>
    %132 = vector.extract_strided_slice %131 {offsets = [0, 0], sizes = [8, 8], strides = [1, 1]} : vector<16x8xf32> to vector<8x8xf32>
    %cst_102 = arith.constant dense<0.000000e+00> : vector<8x768xf32>
    %133 = tpu.matmul %132, %129, %cst_102 {dimension_numbers = #tpu.dot_dimension_numbers<[1], [0], [0], [1], [0, 0, 1, 1], [], []>} : vector<8x8xf32>, vector<8x768xf32>, vector<8x768xf32> -> vector<8x768xf32>
    %134 = vector.extract_strided_slice %133 {offsets = [0, 0], sizes = [4, 768], strides = [1, 1]} : vector<8x768xf32> to vector<4x768xf32>
    %135 = vector.extract_strided_slice %133 {offsets = [4, 0], sizes = [4, 768], strides = [1, 1]} : vector<8x768xf32> to vector<4x768xf32>
    %136 = arith.mulf %133, %133 : vector<8x768xf32>
    %137 = vector.extract_strided_slice %136 {offsets = [0, 0], sizes = [4, 768], strides = [1, 1]} : vector<8x768xf32> to vector<4x768xf32>
    %138 = vector.extract_strided_slice %137 {offsets = [0, 0], sizes = [4, 256], strides = [1, 1]} : vector<4x768xf32> to vector<4x256xf32>
    %139 = vector.extract_strided_slice %137 {offsets = [0, 256], sizes = [4, 256], strides = [1, 1]} : vector<4x768xf32> to vector<4x256xf32>
    %140 = arith.addf %138, %139 : vector<4x256xf32>
    %141 = vector.extract_strided_slice %137 {offsets = [0, 512], sizes = [4, 256], strides = [1, 1]} : vector<4x768xf32> to vector<4x256xf32>
    %142 = arith.addf %140, %141 : vector<4x256xf32>
    %143 = vector.extract_strided_slice %136 {offsets = [4, 0], sizes = [4, 768], strides = [1, 1]} : vector<8x768xf32> to vector<4x768xf32>
    %144 = vector.extract_strided_slice %143 {offsets = [0, 0], sizes = [4, 256], strides = [1, 1]} : vector<4x768xf32> to vector<4x256xf32>
    %145 = vector.extract_strided_slice %143 {offsets = [0, 256], sizes = [4, 256], strides = [1, 1]} : vector<4x768xf32> to vector<4x256xf32>
    %146 = arith.addf %144, %145 : vector<4x256xf32>
    %147 = vector.extract_strided_slice %143 {offsets = [0, 512], sizes = [4, 256], strides = [1, 1]} : vector<4x768xf32> to vector<4x256xf32>
    %148 = arith.addf %146, %147 : vector<4x256xf32>
    %149 = arith.mulf %134, %135 : vector<4x768xf32>
    %150 = vector.extract_strided_slice %149 {offsets = [0, 0], sizes = [4, 256], strides = [1, 1]} : vector<4x768xf32> to vector<4x256xf32>
    %151 = vector.extract_strided_slice %149 {offsets = [0, 256], sizes = [4, 256], strides = [1, 1]} : vector<4x768xf32> to vector<4x256xf32>
    %152 = arith.addf %150, %151 : vector<4x256xf32>
    %153 = vector.extract_strided_slice %149 {offsets = [0, 512], sizes = [4, 256], strides = [1, 1]} : vector<4x768xf32> to vector<4x256xf32>
    %154 = arith.addf %152, %153 : vector<4x256xf32>
    %155 = math.sqrt %142 : vector<4x256xf32>
    %cst_103 = arith.constant 9.99999997E-7 : f32
    %156 = vector.broadcast %cst_103 : f32 to vector<4x256xf32>
    %157 = arith.addf %155, %156 : vector<4x256xf32>
    %158 = arith.mulf %157, %157 : vector<4x256xf32>
    %cst_104 = arith.constant dense<0.000000e+00> : vector<4xf32>
    %159 = vector.multi_reduction <add>, %157, %cst_104 [1] : vector<4x256xf32> to vector<4xf32>
    %160 = vector.shape_cast %159 : vector<4xf32> to vector<4x1xf32>
    %cst_105 = arith.constant 2.560000e+02 : f32
    %161 = vector.broadcast %cst_105 : f32 to vector<4x1xf32>
    %162 = arith.divf %160, %161 : vector<4x1xf32>
    %cst_106 = arith.constant dense<0.000000e+00> : vector<4xf32>
    %163 = vector.multi_reduction <add>, %158, %cst_106 [1] : vector<4x256xf32> to vector<4xf32>
    %164 = vector.shape_cast %163 : vector<4xf32> to vector<4x1xf32>
    %cst_107 = arith.constant 2.560000e+02 : f32
    %165 = vector.broadcast %cst_107 : f32 to vector<4x1xf32>
    %166 = arith.divf %164, %165 : vector<4x1xf32>
    %167 = arith.mulf %162, %162 : vector<4x1xf32>
    %168 = arith.subf %166, %167 : vector<4x1xf32>
    %169 = vector.broadcast %162 : vector<4x1xf32> to vector<4x256xf32>
    %170 = arith.subf %157, %169 : vector<4x256xf32>
    %cst_108 = arith.constant 9.99999974E-6 : f32
    %171 = vector.broadcast %cst_108 : f32 to vector<4x1xf32>
    %172 = arith.addf %168, %171 : vector<4x1xf32>
    %173 = vector.broadcast %172 : vector<4x1xf32> to vector<4x256xf32>
    %174 = arith.mulf %173, %158 : vector<4x256xf32>
    %175 = math.rsqrt %174 : vector<4x256xf32>
    %176 = arith.mulf %170, %175 : vector<4x256xf32>
    %177 = arith.mulf %154, %176 : vector<4x256xf32>
    %cst_109 = arith.constant 0.000000e+00 : f32
    %178 = vector.broadcast %cst_109 : f32 to vector<4x256xf32>
    %179 = arith.minimumf %177, %178 : vector<4x256xf32>
    %cst_110 = arith.constant 9.99999997E-7 : f32
    %180 = vector.broadcast %cst_110 : f32 to vector<4x256xf32>
    %181 = arith.addf %148, %180 : vector<4x256xf32>
    %182 = tpu.reciprocal %181 {approx = true} : vector<4x256xf32> -> vector<4x256xf32>
    %183 = arith.mulf %179, %182 : vector<4x256xf32>
    %184 = vector.extract_strided_slice %134 {offsets = [0, 0], sizes = [4, 256], strides = [1, 1]} : vector<4x768xf32> to vector<4x256xf32>
    %185 = arith.mulf %184, %176 : vector<4x256xf32>
    %186 = vector.extract_strided_slice %135 {offsets = [0, 0], sizes = [4, 256], strides = [1, 1]} : vector<4x768xf32> to vector<4x256xf32>
    %187 = arith.mulf %183, %186 : vector<4x256xf32>
    %188 = arith.subf %185, %187 : vector<4x256xf32>
    %189 = vector.extract_strided_slice %134 {offsets = [0, 256], sizes = [4, 256], strides = [1, 1]} : vector<4x768xf32> to vector<4x256xf32>
    %190 = arith.mulf %189, %176 : vector<4x256xf32>
    %191 = vector.extract_strided_slice %135 {offsets = [0, 256], sizes = [4, 256], strides = [1, 1]} : vector<4x768xf32> to vector<4x256xf32>
    %192 = arith.mulf %183, %191 : vector<4x256xf32>
    %193 = arith.subf %190, %192 : vector<4x256xf32>
    %194 = vector.extract_strided_slice %134 {offsets = [0, 512], sizes = [4, 256], strides = [1, 1]} : vector<4x768xf32> to vector<4x256xf32>
    %195 = arith.mulf %194, %176 : vector<4x256xf32>
    %196 = vector.extract_strided_slice %135 {offsets = [0, 512], sizes = [4, 256], strides = [1, 1]} : vector<4x768xf32> to vector<4x256xf32>
    %197 = arith.mulf %183, %196 : vector<4x256xf32>
    %198 = arith.subf %195, %197 : vector<4x256xf32>
    %199 = tpu.concatenate %188, %193, %198 in 1 : vector<4x256xf32>, vector<4x256xf32>, vector<4x256xf32> -> vector<4x768xf32>
    %c2 = arith.constant 2 : index
    %c0_111 = arith.constant 0 : index
    %c0_112 = arith.constant 0 : index
    %200 = vector.load %arg1[%c2, %c0_111, %c0_112] : memref<4x16x8xf32, #tpu.memory_space<vmem>>, vector<1x16x8xf32>
    %201 = vector.shape_cast %200 : vector<1x16x8xf32> to vector<16x8xf32>
    %202 = vector.extract_strided_slice %201 {offsets = [0, 0], sizes = [8, 4], strides = [1, 1]} : vector<16x8xf32> to vector<8x4xf32>
    %cst_113 = arith.constant dense<0.000000e+00> : vector<8x768xf32>
    %203 = tpu.matmul %202, %199, %cst_113 {dimension_numbers = #tpu.dot_dimension_numbers<[1], [0], [0], [1], [0, 0, 1, 1], [], []>} : vector<8x4xf32>, vector<4x768xf32>, vector<8x768xf32> -> vector<8x768xf32>
    %204 = vector.extract_strided_slice %203 {offsets = [0, 0], sizes = [4, 768], strides = [1, 1]} : vector<8x768xf32> to vector<4x768xf32>
    %205 = vector.extract_strided_slice %203 {offsets = [4, 0], sizes = [4, 768], strides = [1, 1]} : vector<8x768xf32> to vector<4x768xf32>
    %206 = arith.mulf %203, %203 : vector<8x768xf32>
    %207 = vector.extract_strided_slice %206 {offsets = [0, 0], sizes = [4, 768], strides = [1, 1]} : vector<8x768xf32> to vector<4x768xf32>
    %208 = vector.extract_strided_slice %207 {offsets = [0, 0], sizes = [4, 256], strides = [1, 1]} : vector<4x768xf32> to vector<4x256xf32>
    %209 = vector.extract_strided_slice %207 {offsets = [0, 256], sizes = [4, 256], strides = [1, 1]} : vector<4x768xf32> to vector<4x256xf32>
    %210 = arith.addf %208, %209 : vector<4x256xf32>
    %211 = vector.extract_strided_slice %207 {offsets = [0, 512], sizes = [4, 256], strides = [1, 1]} : vector<4x768xf32> to vector<4x256xf32>
    %212 = arith.addf %210, %211 : vector<4x256xf32>
    %213 = vector.extract_strided_slice %206 {offsets = [4, 0], sizes = [4, 768], strides = [1, 1]} : vector<8x768xf32> to vector<4x768xf32>
    %214 = vector.extract_strided_slice %213 {offsets = [0, 0], sizes = [4, 256], strides = [1, 1]} : vector<4x768xf32> to vector<4x256xf32>
    %215 = vector.extract_strided_slice %213 {offsets = [0, 256], sizes = [4, 256], strides = [1, 1]} : vector<4x768xf32> to vector<4x256xf32>
    %216 = arith.addf %214, %215 : vector<4x256xf32>
    %217 = vector.extract_strided_slice %213 {offsets = [0, 512], sizes = [4, 256], strides = [1, 1]} : vector<4x768xf32> to vector<4x256xf32>
    %218 = arith.addf %216, %217 : vector<4x256xf32>
    %219 = arith.mulf %204, %205 : vector<4x768xf32>
    %220 = vector.extract_strided_slice %219 {offsets = [0, 0], sizes = [4, 256], strides = [1, 1]} : vector<4x768xf32> to vector<4x256xf32>
    %221 = vector.extract_strided_slice %219 {offsets = [0, 256], sizes = [4, 256], strides = [1, 1]} : vector<4x768xf32> to vector<4x256xf32>
    %222 = arith.addf %220, %221 : vector<4x256xf32>
    %223 = vector.extract_strided_slice %219 {offsets = [0, 512], sizes = [4, 256], strides = [1, 1]} : vector<4x768xf32> to vector<4x256xf32>
    %224 = arith.addf %222, %223 : vector<4x256xf32>
    %225 = math.sqrt %212 : vector<4x256xf32>
    %cst_114 = arith.constant 9.99999997E-7 : f32
    %226 = vector.broadcast %cst_114 : f32 to vector<4x256xf32>
    %227 = arith.addf %225, %226 : vector<4x256xf32>
    %228 = arith.mulf %227, %227 : vector<4x256xf32>
    %cst_115 = arith.constant dense<0.000000e+00> : vector<4xf32>
    %229 = vector.multi_reduction <add>, %227, %cst_115 [1] : vector<4x256xf32> to vector<4xf32>
    %230 = vector.shape_cast %229 : vector<4xf32> to vector<4x1xf32>
    %cst_116 = arith.constant 2.560000e+02 : f32
    %231 = vector.broadcast %cst_116 : f32 to vector<4x1xf32>
    %232 = arith.divf %230, %231 : vector<4x1xf32>
    %cst_117 = arith.constant dense<0.000000e+00> : vector<4xf32>
    %233 = vector.multi_reduction <add>, %228, %cst_117 [1] : vector<4x256xf32> to vector<4xf32>
    %234 = vector.shape_cast %233 : vector<4xf32> to vector<4x1xf32>
    %cst_118 = arith.constant 2.560000e+02 : f32
    %235 = vector.broadcast %cst_118 : f32 to vector<4x1xf32>
    %236 = arith.divf %234, %235 : vector<4x1xf32>
    %237 = arith.mulf %232, %232 : vector<4x1xf32>
    %238 = arith.subf %236, %237 : vector<4x1xf32>
    %239 = vector.broadcast %232 : vector<4x1xf32> to vector<4x256xf32>
    %240 = arith.subf %227, %239 : vector<4x256xf32>
    %cst_119 = arith.constant 9.99999974E-6 : f32
    %241 = vector.broadcast %cst_119 : f32 to vector<4x1xf32>
    %242 = arith.addf %238, %241 : vector<4x1xf32>
    %243 = vector.broadcast %242 : vector<4x1xf32> to vector<4x256xf32>
    %244 = arith.mulf %243, %228 : vector<4x256xf32>
    %245 = math.rsqrt %244 : vector<4x256xf32>
    %246 = arith.mulf %240, %245 : vector<4x256xf32>
    %247 = arith.mulf %224, %246 : vector<4x256xf32>
    %cst_120 = arith.constant 0.000000e+00 : f32
    %248 = vector.broadcast %cst_120 : f32 to vector<4x256xf32>
    %249 = arith.minimumf %247, %248 : vector<4x256xf32>
    %cst_121 = arith.constant 9.99999997E-7 : f32
    %250 = vector.broadcast %cst_121 : f32 to vector<4x256xf32>
    %251 = arith.addf %218, %250 : vector<4x256xf32>
    %252 = tpu.reciprocal %251 {approx = true} : vector<4x256xf32> -> vector<4x256xf32>
    %253 = arith.mulf %249, %252 : vector<4x256xf32>
    %254 = vector.extract_strided_slice %204 {offsets = [0, 0], sizes = [4, 256], strides = [1, 1]} : vector<4x768xf32> to vector<4x256xf32>
    %255 = arith.mulf %254, %246 : vector<4x256xf32>
    %256 = vector.extract_strided_slice %205 {offsets = [0, 0], sizes = [4, 256], strides = [1, 1]} : vector<4x768xf32> to vector<4x256xf32>
    %257 = arith.mulf %253, %256 : vector<4x256xf32>
    %258 = arith.subf %255, %257 : vector<4x256xf32>
    %259 = vector.extract_strided_slice %204 {offsets = [0, 256], sizes = [4, 256], strides = [1, 1]} : vector<4x768xf32> to vector<4x256xf32>
    %260 = arith.mulf %259, %246 : vector<4x256xf32>
    %261 = vector.extract_strided_slice %205 {offsets = [0, 256], sizes = [4, 256], strides = [1, 1]} : vector<4x768xf32> to vector<4x256xf32>
    %262 = arith.mulf %253, %261 : vector<4x256xf32>
    %263 = arith.subf %260, %262 : vector<4x256xf32>
    %264 = vector.extract_strided_slice %204 {offsets = [0, 512], sizes = [4, 256], strides = [1, 1]} : vector<4x768xf32> to vector<4x256xf32>
    %265 = arith.mulf %264, %246 : vector<4x256xf32>
    %266 = vector.extract_strided_slice %205 {offsets = [0, 512], sizes = [4, 256], strides = [1, 1]} : vector<4x768xf32> to vector<4x256xf32>
    %267 = arith.mulf %253, %266 : vector<4x256xf32>
    %268 = arith.subf %265, %267 : vector<4x256xf32>
    %269 = tpu.concatenate %258, %263, %268 in 1 : vector<4x256xf32>, vector<4x256xf32>, vector<4x256xf32> -> vector<4x768xf32>
    %c3 = arith.constant 3 : index
    %c0_122 = arith.constant 0 : index
    %c0_123 = arith.constant 0 : index
    %270 = vector.load %arg1[%c3, %c0_122, %c0_123] : memref<4x16x8xf32, #tpu.memory_space<vmem>>, vector<1x16x8xf32>
    %271 = vector.shape_cast %270 : vector<1x16x8xf32> to vector<16x8xf32>
    %272 = vector.extract_strided_slice %271 {offsets = [0, 0], sizes = [3, 4], strides = [1, 1]} : vector<16x8xf32> to vector<3x4xf32>
    %c0_124 = arith.constant 0 : index
    %c0_125 = arith.constant 0 : index
    %273 = vector.load %arg2[%c0_124, %c0_125] : memref<768x6xf32, #tpu.memory_space<vmem>>, vector<768x6xf32>
    %cst_126 = arith.constant dense<0.000000e+00> : vector<4x6xf32>
    %274 = tpu.matmul %269, %273, %cst_126 {dimension_numbers = #tpu.dot_dimension_numbers<[1], [0], [0], [1], [0, 0, 1, 1], [], []>} : vector<4x768xf32>, vector<768x6xf32>, vector<4x6xf32> -> vector<4x6xf32>
    %cst_127 = arith.constant dense<0.000000e+00> : vector<3x6xf32>
    %275 = tpu.matmul %272, %274, %cst_127 {dimension_numbers = #tpu.dot_dimension_numbers<[1], [0], [0], [1], [0, 0, 1, 1], [], []>} : vector<3x4xf32>, vector<4x6xf32>, vector<3x6xf32> -> vector<3x6xf32>
    %c0_128 = arith.constant 0 : index
    %c0_129 = arith.constant 0 : index
    %276 = vector.load %arg3[%c0_128, %c0_129] : memref<3x6xf32, #tpu.memory_space<vmem>>, vector<3x6xf32>
    tpu.vector_store %arg3[%c0_128, %c0_129], %275 {strides = array<i32>} : memref<3x6xf32, #tpu.memory_space<vmem>>, vector<3x6xf32>,
    return
  }
}

</mosaic_0001>

<llo_original>
// kernel: complex_rot_forward.1
$region0: #{complex_rot_forward.1}
  #allocation0 [shape = 'u32[]', space=smem, size = 0x4, offset = 0x4, fixed_abs, tag = 'smem constant byte address 0x4 - core index']
  #allocation1 [shape = 'u32[144,128]{1,0:T(1,128)}', space=vmem, size = 0x12000, scoped, tag = 'internal scratch']
  #allocation2 [shape = 'f32[8,768]{1,0:T(8,128)}', space=vmem, size = 0x6000, scoped, tag = 'scratch operand']
  #allocation3 [shape = 's32[6]{0}', space=sflag, size = 0x18, scoped, tag = 'scratch operand']
  #allocation4 [shape = 's32[]', space=sflag, size = 0x4, offset = 0, fixed_abs, tag = 'sflag constant byte address 0x0 - dummy sync flag']
  #allocation5 [shape = 's32[]', space=sflag, size = 0x4, offset = 0, fixed_abs, tag = 'sflag constant byte address 0x0 - dummy sync flag']
  #allocation6 [shape = 's32[]', space=sflag, size = 0x4, offset = 0, fixed_abs, tag = 'sflag constant byte address 0x0 - dummy sync flag']
  #allocation7 [shape = 's32[]', space=sflag, size = 0x4, offset = 0, fixed_abs, tag = 'sflag constant byte address 0x0 - dummy sync flag']
  #allocation8 [shape = 's32[]', space=sflag, size = 0x4, offset = 0, fixed_abs, tag = 'sflag constant byte address 0x0 - dummy sync flag']
  #allocation9 [shape = 's32[]', space=sflag, size = 0x4, offset = 0, fixed_abs, tag = 'sflag constant byte address 0x0 - dummy sync flag']
  %s0 = inlined_call_operand.vmem [shape: f32[2,8,3,128], index: 0, kind: input, shape index: {}]
  %s1 = inlined_call_operand.vmem [shape: f32[4,16,8], index: 1, kind: input, shape index: {}]
  %s2 = inlined_call_operand.vmem [shape: f32[768,6], index: 2, kind: input, shape index: {}]
  %s3 = inlined_call_operand.vmem [shape: f32[3,6], index: 3, kind: output, shape index: {}]
  %s4 = sld [smem:[#allocation0]]
  $region240: #{complex_rot_forward.1} parent=0
    _
  %s6 = ssub.s32 1, %s4
  %s7 = scalar_select 0, %s6, %s4
  // Predicated region
  $region2: #{complex_rot_forward.1} parent=0 // pred_check
    _
  $region3: #{complex_rot_forward.1} parent=0 // pred_check_branch
    %9 = sbr.rel (0) target = $region5
  $region4: #{complex_rot_forward.1} parent=0 // pred_region
    _
  $region5: #{complex_rot_forward.1} parent=0 // pred_fallthru
    _
  // Predicated region
  $region6: #{complex_rot_forward.1} parent=0 // pred_check
    _
  $region7: #{complex_rot_forward.1} parent=0 // pred_check_branch
    %11 = sbr.rel (0) target = $region9
  $region8: #{complex_rot_forward.1} parent=0 // pred_region
    _
  $region9: #{complex_rot_forward.1} parent=0 // pred_fallthru
    _
  %p13 = scmp.lt.u32.totalorder 1, 8
  %p14 = pneg %p13
  // Predicated region
  $region10: #{complex_rot_forward.1} parent=0 // pred_check
    _
  $region11: #{complex_rot_forward.1} parent=0 // pred_check_branch
    %16 = sbr.rel (%p13) target = $region13
  $region12: #{complex_rot_forward.1} parent=0 // pred_region
    %s45 = sand.u32 1, 7
    %p46 = scmp.eq.s32.totalorder %s45, 0
    %p47 = pneg %p46
    // Predicated region
    $region25: #{complex_rot_forward.1} parent=12 // pred_check
      _
    $region26: #{complex_rot_forward.1} parent=12 // pred_check_branch
      %49 = sbr.rel (%p46) target = $region28
    $region27: #{complex_rot_forward.1} parent=12 // pred_region
      %s50 = sand.u32 1, 7
      %s51 = ssub.s32 1, %s50
      %s52 = scalar_lea.vmem %s0, %s51
      %s53 = ssub.s32 1, %s50
      %s54 = scalar_lea.vmem [#allocation2], %s53
      loop: start=0, step=1, limit=1
      $region29: #{complex_rot_forward.1} parent=27 // loop_pre_header
        _
      $region30: #{complex_rot_forward.1} parent=27 // loop_header
        %s56 = sphi 0, %s60
        %p57 = scmp.ge.s32.totalorder %s56, 1
        %s61 = sphi %s0, %s0
        %s62 = sphi [#allocation2], [#allocation2]
      $region31: #{complex_rot_forward.1} parent=27 // loop_header_branch
        %59 = sbr.rel (%p57) target = $region35
      $region32: #{complex_rot_forward.1} parent=27 // loop_body
        _
      $region33: #{complex_rot_forward.1} parent=27 // loop_footer
        %s60 = sadd.s32 1, %s56
      $region34: #{complex_rot_forward.1} parent=27 // loop_footer_branch
        %55 = sbr.rel target = $region30
      $region35: #{complex_rot_forward.1} parent=27 // loop_exit
        _
      %s63 = sshllo.u32 0, %s50
      loop: start=0, step=1, limit=1
      $region36: #{complex_rot_forward.1} parent=27 // loop_pre_header
        _
      $region37: #{complex_rot_forward.1} parent=27 // loop_header
        %s65 = sphi 0, %s69
        %p66 = scmp.ge.s32.totalorder %s65, 1
        %s70 = sphi %s52, %s52
        %s71 = sphi %s54, %s54
      $region38: #{complex_rot_forward.1} parent=27 // loop_header_branch
        %68 = sbr.rel (%p66) target = $region42
      $region39: #{complex_rot_forward.1} parent=27 // loop_body
        %v72 = vld [vmem:[%s70] sm:%s63]
        %73 = vst [vmem:[%s71] sm:%s63] %v72
        %v74 = vld [vmem:[%s70 + $0x4] sm:%s63]
        %75 = vst [vmem:[%s71 + $0x1] sm:%s63] %v74
        %v76 = vld [vmem:[%s70 + $0x8] sm:%s63]
        %77 = vst [vmem:[%s71 + $0x2] sm:%s63] %v76
        %v78 = vld [vmem:[%s70 + $0xc] sm:%s63]
        %79 = vst [vmem:[%s71 + $0x3] sm:%s63] %v78
        %v80 = vld [vmem:[%s70 + $0x10] sm:%s63]
        %81 = vst [vmem:[%s71 + $0x4] sm:%s63] %v80
        %v82 = vld [vmem:[%s70 + $0x14] sm:%s63]
        %83 = vst [vmem:[%s71 + $0x5] sm:%s63] %v82
        %v84 = vld [vmem:[%s70 + $0x18] sm:%s63]
        %85 = vst [vmem:[%s71 + $0x6] sm:%s63] %v84
        %v86 = vld [vmem:[%s70 + $0x1c] sm:%s63]
        %87 = vst [vmem:[%s71 + $0x7] sm:%s63] %v86
      $region40: #{complex_rot_forward.1} parent=27 // loop_footer
        %s69 = sadd.s32 1, %s65
      $region41: #{complex_rot_forward.1} parent=27 // loop_footer_branch
        %64 = sbr.rel target = $region37
      $region42: #{complex_rot_forward.1} parent=27 // loop_exit
        _
    $region28: #{complex_rot_forward.1} parent=12 // pred_fallthru
      _
  $region13: #{complex_rot_forward.1} parent=0 // pred_fallthru
    _
  // Predicated region
  $region14: #{complex_rot_forward.1} parent=0 // pred_check
    %p17 = pneg %p13
  $region15: #{complex_rot_forward.1} parent=0 // pred_check_branch
    %19 = sbr.rel (%p17) target = $region17
  $region16: #{complex_rot_forward.1} parent=0 // pred_region
    %s20 = sshllo.u32 0, 1
    loop: start=0, step=1, limit=1
    $region18: #{complex_rot_forward.1} parent=16 // loop_pre_header
      _
    $region19: #{complex_rot_forward.1} parent=16 // loop_header
      %s22 = sphi 0, %s26
      %p23 = scmp.ge.s32.totalorder %s22, 1
      %s27 = sphi %s0, %s0
      %s28 = sphi [#allocation2], [#allocation2]
    $region20: #{complex_rot_forward.1} parent=16 // loop_header_branch
      %25 = sbr.rel (%p23) target = $region24
    $region21: #{complex_rot_forward.1} parent=16 // loop_body
      %v29 = vld [vmem:[%s27] sm:%s20]
      %30 = vst [vmem:[%s28] sm:%s20] %v29
      %v31 = vld [vmem:[%s27 + $0x4] sm:%s20]
      %32 = vst [vmem:[%s28 + $0x1] sm:%s20] %v31
      %v33 = vld [vmem:[%s27 + $0x8] sm:%s20]
      %34 = vst [vmem:[%s28 + $0x2] sm:%s20] %v33
      %v35 = vld [vmem:[%s27 + $0xc] sm:%s20]
      %36 = vst [vmem:[%s28 + $0x3] sm:%s20] %v35
      %v37 = vld [vmem:[%s27 + $0x10] sm:%s20]
      %38 = vst [vmem:[%s28 + $0x4] sm:%s20] %v37
      %v39 = vld [vmem:[%s27 + $0x14] sm:%s20]
      %40 = vst [vmem:[%s28 + $0x5] sm:%s20] %v39
      %v41 = vld [vmem:[%s27 + $0x18] sm:%s20]
      %42 = vst [vmem:[%s28 + $0x6] sm:%s20] %v41
      %v43 = vld [vmem:[%s27 + $0x1c] sm:%s20]
      %44 = vst [vmem:[%s28 + $0x7] sm:%s20] %v43
    $region22: #{complex_rot_forward.1} parent=16 // loop_footer
      %s26 = sadd.s32 1, %s22
    $region23: #{complex_rot_forward.1} parent=16 // loop_footer_branch
      %21 = sbr.rel target = $region19
    $region24: #{complex_rot_forward.1} parent=16 // loop_exit
      _
  $region17: #{complex_rot_forward.1} parent=0 // pred_fallthru
    _
  // Predicated region
  $region43: #{complex_rot_forward.1} parent=0 // pred_check
    _
  $region44: #{complex_rot_forward.1} parent=0 // pred_check_branch
    %90 = sbr.rel (0) target = $region46
  $region45: #{complex_rot_forward.1} parent=0 // pred_region
    %91 = vsyncadd [#allocation3], 128
  $region46: #{complex_rot_forward.1} parent=0 // pred_fallthru
    _
  %s92 = scalar_lea.vmem %s0, 32
  %s93 = scalar_lea.vmem [#allocation2], 8
  %s94 = scalar_lea.sflag [#allocation3], 1
  %p96 = scmp.lt.u32.totalorder 1, 8
  %p97 = pneg %p96
  // Predicated region
  $region47: #{complex_rot_forward.1} parent=0 // pred_check
    _
  $region48: #{complex_rot_forward.1} parent=0 // pred_check_branch
    %99 = sbr.rel (%p96) target = $region50
  $region49: #{complex_rot_forward.1} parent=0 // pred_region
    %s128 = sand.u32 1, 7
    %p129 = scmp.eq.s32.totalorder %s128, 0
    %p130 = pneg %p129
    // Predicated region
    $region62: #{complex_rot_forward.1} parent=49 // pred_check
      _
    $region63: #{complex_rot_forward.1} parent=49 // pred_check_branch
      %132 = sbr.rel (%p129) target = $region65
    $region64: #{complex_rot_forward.1} parent=49 // pred_region
      %s133 = sand.u32 1, 7
      %s134 = ssub.s32 1, %s133
      %s135 = scalar_lea.vmem %s92, %s134
      %s136 = ssub.s32 1, %s133
      %s137 = scalar_lea.vmem %s93, %s136 [#allocation2]
      loop: start=0, step=1, limit=1
      $region66: #{complex_rot_forward.1} parent=64 // loop_pre_header
        _
      $region67: #{complex_rot_forward.1} parent=64 // loop_header
        %s139 = sphi 0, %s143
        %p140 = scmp.ge.s32.totalorder %s139, 1
        %s144 = sphi %s92, %s92
        %s145 = sphi %s93, %s93
      $region68: #{complex_rot_forward.1} parent=64 // loop_header_branch
        %142 = sbr.rel (%p140) target = $region72
      $region69: #{complex_rot_forward.1} parent=64 // loop_body
        _
      $region70: #{complex_rot_forward.1} parent=64 // loop_footer
        %s143 = sadd.s32 1, %s139
      $region71: #{complex_rot_forward.1} parent=64 // loop_footer_branch
        %138 = sbr.rel target = $region67
      $region72: #{complex_rot_forward.1} parent=64 // loop_exit
        _
      %s146 = sshllo.u32 0, %s133
      loop: start=0, step=1, limit=1
      $region73: #{complex_rot_forward.1} parent=64 // loop_pre_header
        _
      $region74: #{complex_rot_forward.1} parent=64 // loop_header
        %s148 = sphi 0, %s152
        %p149 = scmp.ge.s32.totalorder %s148, 1
        %s153 = sphi %s135, %s135
        %s154 = sphi %s137, %s137
      $region75: #{complex_rot_forward.1} parent=64 // loop_header_branch
        %151 = sbr.rel (%p149) target = $region79
      $region76: #{complex_rot_forward.1} parent=64 // loop_body
        %v155 = vld [vmem:[%s153] sm:%s146]
        %156 = vst [vmem:[%s154] sm:%s146] %v155
        %v157 = vld [vmem:[%s153 + $0x4] sm:%s146]
        %158 = vst [vmem:[%s154 + $0x1] sm:%s146] %v157
        %v159 = vld [vmem:[%s153 + $0x8] sm:%s146]
        %160 = vst [vmem:[%s154 + $0x2] sm:%s146] %v159
        %v161 = vld [vmem:[%s153 + $0xc] sm:%s146]
        %162 = vst [vmem:[%s154 + $0x3] sm:%s146] %v161
        %v163 = vld [vmem:[%s153 + $0x10] sm:%s146]
        %164 = vst [vmem:[%s154 + $0x4] sm:%s146] %v163
        %v165 = vld [vmem:[%s153 + $0x14] sm:%s146]
        %166 = vst [vmem:[%s154 + $0x5] sm:%s146] %v165
        %v167 = vld [vmem:[%s153 + $0x18] sm:%s146]
        %168 = vst [vmem:[%s154 + $0x6] sm:%s146] %v167
        %v169 = vld [vmem:[%s153 + $0x1c] sm:%s146]
        %170 = vst [vmem:[%s154 + $0x7] sm:%s146] %v169
      $region77: #{complex_rot_forward.1} parent=64 // loop_footer
        %s152 = sadd.s32 1, %s148
      $region78: #{complex_rot_forward.1} parent=64 // loop_footer_branch
        %147 = sbr.rel target = $region74
      $region79: #{complex_rot_forward.1} parent=64 // loop_exit
        _
    $region65: #{complex_rot_forward.1} parent=49 // pred_fallthru
      _
  $region50: #{complex_rot_forward.1} parent=0 // pred_fallthru
    _
  // Predicated region
  $region51: #{complex_rot_forward.1} parent=0 // pred_check
    %p100 = pneg %p96
  $region52: #{complex_rot_forward.1} parent=0 // pred_check_branch
    %102 = sbr.rel (%p100) target = $region54
  $region53: #{complex_rot_forward.1} parent=0 // pred_region
    %s103 = sshllo.u32 0, 1
    loop: start=0, step=1, limit=1
    $region55: #{complex_rot_forward.1} parent=53 // loop_pre_header
      _
    $region56: #{complex_rot_forward.1} parent=53 // loop_header
      %s105 = sphi 0, %s109
      %p106 = scmp.ge.s32.totalorder %s105, 1
      %s110 = sphi %s92, %s92
      %s111 = sphi %s93, %s93
    $region57: #{complex_rot_forward.1} parent=53 // loop_header_branch
      %108 = sbr.rel (%p106) target = $region61
    $region58: #{complex_rot_forward.1} parent=53 // loop_body
      %v112 = vld [vmem:[%s110] sm:%s103]
      %113 = vst [vmem:[%s111] sm:%s103] %v112
      %v114 = vld [vmem:[%s110 + $0x4] sm:%s103]
      %115 = vst [vmem:[%s111 + $0x1] sm:%s103] %v114
      %v116 = vld [vmem:[%s110 + $0x8] sm:%s103]
      %117 = vst [vmem:[%s111 + $0x2] sm:%s103] %v116
      %v118 = vld [vmem:[%s110 + $0xc] sm:%s103]
      %119 = vst [vmem:[%s111 + $0x3] sm:%s103] %v118
      %v120 = vld [vmem:[%s110 + $0x10] sm:%s103]
      %121 = vst [vmem:[%s111 + $0x4] sm:%s103] %v120
      %v122 = vld [vmem:[%s110 + $0x14] sm:%s103]
      %123 = vst [vmem:[%s111 + $0x5] sm:%s103] %v122
      %v124 = vld [vmem:[%s110 + $0x18] sm:%s103]
      %125 = vst [vmem:[%s111 + $0x6] sm:%s103] %v124
      %v126 = vld [vmem:[%s110 + $0x1c] sm:%s103]
      %127 = vst [vmem:[%s111 + $0x7] sm:%s103] %v126
    $region59: #{complex_rot_forward.1} parent=53 // loop_footer
      %s109 = sadd.s32 1, %s105
    $region60: #{complex_rot_forward.1} parent=53 // loop_footer_branch
      %104 = sbr.rel target = $region56
    $region61: #{complex_rot_forward.1} parent=53 // loop_exit
      _
  $region54: #{complex_rot_forward.1} parent=0 // pred_fallthru
    _
  // Predicated region
  $region80: #{complex_rot_forward.1} parent=0 // pred_check
    _
  $region81: #{complex_rot_forward.1} parent=0 // pred_check_branch
    %173 = sbr.rel (0) target = $region83
  $region82: #{complex_rot_forward.1} parent=0 // pred_region
    %174 = vsyncadd %s94, 128
  $region83: #{complex_rot_forward.1} parent=0 // pred_fallthru
    _
  %s175 = scalar_lea.vmem %s0, 1
  %s176 = scalar_lea.vmem [#allocation2], 16
  %s177 = scalar_lea.sflag [#allocation3], 2
  %p179 = scmp.lt.u32.totalorder 1, 8
  %p180 = pneg %p179
  // Predicated region
  $region84: #{complex_rot_forward.1} parent=0 // pred_check
    _
  $region85: #{complex_rot_forward.1} parent=0 // pred_check_branch
    %182 = sbr.rel (%p179) target = $region87
  $region86: #{complex_rot_forward.1} parent=0 // pred_region
    %s211 = sand.u32 1, 7
    %p212 = scmp.eq.s32.totalorder %s211, 0
    %p213 = pneg %p212
    // Predicated region
    $region99: #{complex_rot_forward.1} parent=86 // pred_check
      _
    $region100: #{complex_rot_forward.1} parent=86 // pred_check_branch
      %215 = sbr.rel (%p212) target = $region102
    $region101: #{complex_rot_forward.1} parent=86 // pred_region
      %s216 = sand.u32 1, 7
      %s217 = ssub.s32 1, %s216
      %s218 = scalar_lea.vmem %s175, %s217
      %s219 = ssub.s32 1, %s216
      %s220 = scalar_lea.vmem %s176, %s219 [#allocation2]
      loop: start=0, step=1, limit=1
      $region103: #{complex_rot_forward.1} parent=101 // loop_pre_header
        _
      $region104: #{complex_rot_forward.1} parent=101 // loop_header
        %s222 = sphi 0, %s226
        %p223 = scmp.ge.s32.totalorder %s222, 1
        %s227 = sphi %s175, %s175
        %s228 = sphi %s176, %s176
      $region105: #{complex_rot_forward.1} parent=101 // loop_header_branch
        %225 = sbr.rel (%p223) target = $region109
      $region106: #{complex_rot_forward.1} parent=101 // loop_body
        _
      $region107: #{complex_rot_forward.1} parent=101 // loop_footer
        %s226 = sadd.s32 1, %s222
      $region108: #{complex_rot_forward.1} parent=101 // loop_footer_branch
        %221 = sbr.rel target = $region104
      $region109: #{complex_rot_forward.1} parent=101 // loop_exit
        _
      %s229 = sshllo.u32 0, %s216
      loop: start=0, step=1, limit=1
      $region110: #{complex_rot_forward.1} parent=101 // loop_pre_header
        _
      $region111: #{complex_rot_forward.1} parent=101 // loop_header
        %s231 = sphi 0, %s235
        %p232 = scmp.ge.s32.totalorder %s231, 1
        %s236 = sphi %s218, %s218
        %s237 = sphi %s220, %s220
      $region112: #{complex_rot_forward.1} parent=101 // loop_header_branch
        %234 = sbr.rel (%p232) target = $region116
      $region113: #{complex_rot_forward.1} parent=101 // loop_body
        %v238 = vld [vmem:[%s236] sm:%s229]
        %239 = vst [vmem:[%s237] sm:%s229] %v238
        %v240 = vld [vmem:[%s236 + $0x4] sm:%s229]
        %241 = vst [vmem:[%s237 + $0x1] sm:%s229] %v240
        %v242 = vld [vmem:[%s236 + $0x8] sm:%s229]
        %243 = vst [vmem:[%s237 + $0x2] sm:%s229] %v242
        %v244 = vld [vmem:[%s236 + $0xc] sm:%s229]
        %245 = vst [vmem:[%s237 + $0x3] sm:%s229] %v244
        %v246 = vld [vmem:[%s236 + $0x10] sm:%s229]
        %247 = vst [vmem:[%s237 + $0x4] sm:%s229] %v246
        %v248 = vld [vmem:[%s236 + $0x14] sm:%s229]
        %249 = vst [vmem:[%s237 + $0x5] sm:%s229] %v248
        %v250 = vld [vmem:[%s236 + $0x18] sm:%s229]
        %251 = vst [vmem:[%s237 + $0x6] sm:%s229] %v250
        %v252 = vld [vmem:[%s236 + $0x1c] sm:%s229]
        %253 = vst [vmem:[%s237 + $0x7] sm:%s229] %v252
      $region114: #{complex_rot_forward.1} parent=101 // loop_footer
        %s235 = sadd.s32 1, %s231
      $region115: #{complex_rot_forward.1} parent=101 // loop_footer_branch
        %230 = sbr.rel target = $region111
      $region116: #{complex_rot_forward.1} parent=101 // loop_exit
        _
    $region102: #{complex_rot_forward.1} parent=86 // pred_fallthru
      _
  $region87: #{complex_rot_forward.1} parent=0 // pred_fallthru
    _
  // Predicated region
  $region88: #{complex_rot_forward.1} parent=0 // pred_check
    %p183 = pneg %p179
  $region89: #{complex_rot_forward.1} parent=0 // pred_check_branch
    %185 = sbr.rel (%p183) target = $region91
  $region90: #{complex_rot_forward.1} parent=0 // pred_region
    %s186 = sshllo.u32 0, 1
    loop: start=0, step=1, limit=1
    $region92: #{complex_rot_forward.1} parent=90 // loop_pre_header
      _
    $region93: #{complex_rot_forward.1} parent=90 // loop_header
      %s188 = sphi 0, %s192
      %p189 = scmp.ge.s32.totalorder %s188, 1
      %s193 = sphi %s175, %s175
      %s194 = sphi %s176, %s176
    $region94: #{complex_rot_forward.1} parent=90 // loop_header_branch
      %191 = sbr.rel (%p189) target = $region98
    $region95: #{complex_rot_forward.1} parent=90 // loop_body
      %v195 = vld [vmem:[%s193] sm:%s186]
      %196 = vst [vmem:[%s194] sm:%s186] %v195
      %v197 = vld [vmem:[%s193 + $0x4] sm:%s186]
      %198 = vst [vmem:[%s194 + $0x1] sm:%s186] %v197
      %v199 = vld [vmem:[%s193 + $0x8] sm:%s186]
      %200 = vst [vmem:[%s194 + $0x2] sm:%s186] %v199
      %v201 = vld [vmem:[%s193 + $0xc] sm:%s186]
      %202 = vst [vmem:[%s194 + $0x3] sm:%s186] %v201
      %v203 = vld [vmem:[%s193 + $0x10] sm:%s186]
      %204 = vst [vmem:[%s194 + $0x4] sm:%s186] %v203
      %v205 = vld [vmem:[%s193 + $0x14] sm:%s186]
      %206 = vst [vmem:[%s194 + $0x5] sm:%s186] %v205
      %v207 = vld [vmem:[%s193 + $0x18] sm:%s186]
      %208 = vst [vmem:[%s194 + $0x6] sm:%s186] %v207
      %v209 = vld [vmem:[%s193 + $0x1c] sm:%s186]
      %210 = vst [vmem:[%s194 + $0x7] sm:%s186] %v209
    $region96: #{complex_rot_forward.1} parent=90 // loop_footer
      %s192 = sadd.s32 1, %s188
    $region97: #{complex_rot_forward.1} parent=90 // loop_footer_branch
      %187 = sbr.rel target = $region93
    $region98: #{complex_rot_forward.1} parent=90 // loop_exit
      _
  $region91: #{complex_rot_forward.1} parent=0 // pred_fallthru
    _
  // Predicated region
  $region117: #{complex_rot_forward.1} parent=0 // pred_check
    _
  $region118: #{complex_rot_forward.1} parent=0 // pred_check_branch
    %256 = sbr.rel (0) target = $region120
  $region119: #{complex_rot_forward.1} parent=0 // pred_region
    %257 = vsyncadd %s177, 128
  $region120: #{complex_rot_forward.1} parent=0 // pred_fallthru
    _
  %s258 = scalar_lea.vmem %s0, 33
  %s259 = scalar_lea.vmem [#allocation2], 24
  %s260 = scalar_lea.sflag [#allocation3], 3
  %p262 = scmp.lt.u32.totalorder 1, 8
  %p263 = pneg %p262
  // Predicated region
  $region121: #{complex_rot_forward.1} parent=0 // pred_check
    _
  $region122: #{complex_rot_forward.1} parent=0 // pred_check_branch
    %265 = sbr.rel (%p262) target = $region124
  $region123: #{complex_rot_forward.1} parent=0 // pred_region
    %s294 = sand.u32 1, 7
    %p295 = scmp.eq.s32.totalorder %s294, 0
    %p296 = pneg %p295
    // Predicated region
    $region136: #{complex_rot_forward.1} parent=123 // pred_check
      _
    $region137: #{complex_rot_forward.1} parent=123 // pred_check_branch
      %298 = sbr.rel (%p295) target = $region139
    $region138: #{complex_rot_forward.1} parent=123 // pred_region
      %s299 = sand.u32 1, 7
      %s300 = ssub.s32 1, %s299
      %s301 = scalar_lea.vmem %s258, %s300
      %s302 = ssub.s32 1, %s299
      %s303 = scalar_lea.vmem %s259, %s302 [#allocation2]
      loop: start=0, step=1, limit=1
      $region140: #{complex_rot_forward.1} parent=138 // loop_pre_header
        _
      $region141: #{complex_rot_forward.1} parent=138 // loop_header
        %s305 = sphi 0, %s309
        %p306 = scmp.ge.s32.totalorder %s305, 1
        %s310 = sphi %s258, %s258
        %s311 = sphi %s259, %s259
      $region142: #{complex_rot_forward.1} parent=138 // loop_header_branch
        %308 = sbr.rel (%p306) target = $region146
      $region143: #{complex_rot_forward.1} parent=138 // loop_body
        _
      $region144: #{complex_rot_forward.1} parent=138 // loop_footer
        %s309 = sadd.s32 1, %s305
      $region145: #{complex_rot_forward.1} parent=138 // loop_footer_branch
        %304 = sbr.rel target = $region141
      $region146: #{complex_rot_forward.1} parent=138 // loop_exit
        _
      %s312 = sshllo.u32 0, %s299
      loop: start=0, step=1, limit=1
      $region147: #{complex_rot_forward.1} parent=138 // loop_pre_header
        _
      $region148: #{complex_rot_forward.1} parent=138 // loop_header
        %s314 = sphi 0, %s318
        %p315 = scmp.ge.s32.totalorder %s314, 1
        %s319 = sphi %s301, %s301
        %s320 = sphi %s303, %s303
      $region149: #{complex_rot_forward.1} parent=138 // loop_header_branch
        %317 = sbr.rel (%p315) target = $region153
      $region150: #{complex_rot_forward.1} parent=138 // loop_body
        %v321 = vld [vmem:[%s319] sm:%s312]
        %322 = vst [vmem:[%s320] sm:%s312] %v321
        %v323 = vld [vmem:[%s319 + $0x4] sm:%s312]
        %324 = vst [vmem:[%s320 + $0x1] sm:%s312] %v323
        %v325 = vld [vmem:[%s319 + $0x8] sm:%s312]
        %326 = vst [vmem:[%s320 + $0x2] sm:%s312] %v325
        %v327 = vld [vmem:[%s319 + $0xc] sm:%s312]
        %328 = vst [vmem:[%s320 + $0x3] sm:%s312] %v327
        %v329 = vld [vmem:[%s319 + $0x10] sm:%s312]
        %330 = vst [vmem:[%s320 + $0x4] sm:%s312] %v329
        %v331 = vld [vmem:[%s319 + $0x14] sm:%s312]
        %332 = vst [vmem:[%s320 + $0x5] sm:%s312] %v331
        %v333 = vld [vmem:[%s319 + $0x18] sm:%s312]
        %334 = vst [vmem:[%s320 + $0x6] sm:%s312] %v333
        %v335 = vld [vmem:[%s319 + $0x1c] sm:%s312]
        %336 = vst [vmem:[%s320 + $0x7] sm:%s312] %v335
      $region151: #{complex_rot_forward.1} parent=138 // loop_footer
        %s318 = sadd.s32 1, %s314
      $region152: #{complex_rot_forward.1} parent=138 // loop_footer_branch
        %313 = sbr.rel target = $region148
      $region153: #{complex_rot_forward.1} parent=138 // loop_exit
        _
    $region139: #{complex_rot_forward.1} parent=123 // pred_fallthru
      _
  $region124: #{complex_rot_forward.1} parent=0 // pred_fallthru
    _
  // Predicated region
  $region125: #{complex_rot_forward.1} parent=0 // pred_check
    %p266 = pneg %p262
  $region126: #{complex_rot_forward.1} parent=0 // pred_check_branch
    %268 = sbr.rel (%p266) target = $region128
  $region127: #{complex_rot_forward.1} parent=0 // pred_region
    %s269 = sshllo.u32 0, 1
    loop: start=0, step=1, limit=1
    $region129: #{complex_rot_forward.1} parent=127 // loop_pre_header
      _
    $region130: #{complex_rot_forward.1} parent=127 // loop_header
      %s271 = sphi 0, %s275
      %p272 = scmp.ge.s32.totalorder %s271, 1
      %s276 = sphi %s258, %s258
      %s277 = sphi %s259, %s259
    $region131: #{complex_rot_forward.1} parent=127 // loop_header_branch
      %274 = sbr.rel (%p272) target = $region135
    $region132: #{complex_rot_forward.1} parent=127 // loop_body
      %v278 = vld [vmem:[%s276] sm:%s269]
      %279 = vst [vmem:[%s277] sm:%s269] %v278
      %v280 = vld [vmem:[%s276 + $0x4] sm:%s269]
      %281 = vst [vmem:[%s277 + $0x1] sm:%s269] %v280
      %v282 = vld [vmem:[%s276 + $0x8] sm:%s269]
      %283 = vst [vmem:[%s277 + $0x2] sm:%s269] %v282
      %v284 = vld [vmem:[%s276 + $0xc] sm:%s269]
      %285 = vst [vmem:[%s277 + $0x3] sm:%s269] %v284
      %v286 = vld [vmem:[%s276 + $0x10] sm:%s269]
      %287 = vst [vmem:[%s277 + $0x4] sm:%s269] %v286
      %v288 = vld [vmem:[%s276 + $0x14] sm:%s269]
      %289 = vst [vmem:[%s277 + $0x5] sm:%s269] %v288
      %v290 = vld [vmem:[%s276 + $0x18] sm:%s269]
      %291 = vst [vmem:[%s277 + $0x6] sm:%s269] %v290
      %v292 = vld [vmem:[%s276 + $0x1c] sm:%s269]
      %293 = vst [vmem:[%s277 + $0x7] sm:%s269] %v292
    $region133: #{complex_rot_forward.1} parent=127 // loop_footer
      %s275 = sadd.s32 1, %s271
    $region134: #{complex_rot_forward.1} parent=127 // loop_footer_branch
      %270 = sbr.rel target = $region130
    $region135: #{complex_rot_forward.1} parent=127 // loop_exit
      _
  $region128: #{complex_rot_forward.1} parent=0 // pred_fallthru
    _
  // Predicated region
  $region154: #{complex_rot_forward.1} parent=0 // pred_check
    _
  $region155: #{complex_rot_forward.1} parent=0 // pred_check_branch
    %339 = sbr.rel (0) target = $region157
  $region156: #{complex_rot_forward.1} parent=0 // pred_region
    %340 = vsyncadd %s260, 128
  $region157: #{complex_rot_forward.1} parent=0 // pred_fallthru
    _
  %s341 = scalar_lea.vmem %s0, 2
  %s342 = scalar_lea.vmem [#allocation2], 32
  %s343 = scalar_lea.sflag [#allocation3], 4
  %p345 = scmp.lt.u32.totalorder 1, 8
  %p346 = pneg %p345
  // Predicated region
  $region158: #{complex_rot_forward.1} parent=0 // pred_check
    _
  $region159: #{complex_rot_forward.1} parent=0 // pred_check_branch
    %348 = sbr.rel (%p345) target = $region161
  $region160: #{complex_rot_forward.1} parent=0 // pred_region
    %s377 = sand.u32 1, 7
    %p378 = scmp.eq.s32.totalorder %s377, 0
    %p379 = pneg %p378
    // Predicated region
    $region173: #{complex_rot_forward.1} parent=160 // pred_check
      _
    $region174: #{complex_rot_forward.1} parent=160 // pred_check_branch
      %381 = sbr.rel (%p378) target = $region176
    $region175: #{complex_rot_forward.1} parent=160 // pred_region
      %s382 = sand.u32 1, 7
      %s383 = ssub.s32 1, %s382
      %s384 = scalar_lea.vmem %s341, %s383
      %s385 = ssub.s32 1, %s382
      %s386 = scalar_lea.vmem %s342, %s385 [#allocation2]
      loop: start=0, step=1, limit=1
      $region177: #{complex_rot_forward.1} parent=175 // loop_pre_header
        _
      $region178: #{complex_rot_forward.1} parent=175 // loop_header
        %s388 = sphi 0, %s392
        %p389 = scmp.ge.s32.totalorder %s388, 1
        %s393 = sphi %s341, %s341
        %s394 = sphi %s342, %s342
      $region179: #{complex_rot_forward.1} parent=175 // loop_header_branch
        %391 = sbr.rel (%p389) target = $region183
      $region180: #{complex_rot_forward.1} parent=175 // loop_body
        _
      $region181: #{complex_rot_forward.1} parent=175 // loop_footer
        %s392 = sadd.s32 1, %s388
      $region182: #{complex_rot_forward.1} parent=175 // loop_footer_branch
        %387 = sbr.rel target = $region178
      $region183: #{complex_rot_forward.1} parent=175 // loop_exit
        _
      %s395 = sshllo.u32 0, %s382
      loop: start=0, step=1, limit=1
      $region184: #{complex_rot_forward.1} parent=175 // loop_pre_header
        _
      $region185: #{complex_rot_forward.1} parent=175 // loop_header
        %s397 = sphi 0, %s401
        %p398 = scmp.ge.s32.totalorder %s397, 1
        %s402 = sphi %s384, %s384
        %s403 = sphi %s386, %s386
      $region186: #{complex_rot_forward.1} parent=175 // loop_header_branch
        %400 = sbr.rel (%p398) target = $region190
      $region187: #{complex_rot_forward.1} parent=175 // loop_body
        %v404 = vld [vmem:[%s402] sm:%s395]
        %405 = vst [vmem:[%s403] sm:%s395] %v404
        %v406 = vld [vmem:[%s402 + $0x4] sm:%s395]
        %407 = vst [vmem:[%s403 + $0x1] sm:%s395] %v406
        %v408 = vld [vmem:[%s402 + $0x8] sm:%s395]
        %409 = vst [vmem:[%s403 + $0x2] sm:%s395] %v408
        %v410 = vld [vmem:[%s402 + $0xc] sm:%s395]
        %411 = vst [vmem:[%s403 + $0x3] sm:%s395] %v410
        %v412 = vld [vmem:[%s402 + $0x10] sm:%s395]
        %413 = vst [vmem:[%s403 + $0x4] sm:%s395] %v412
        %v414 = vld [vmem:[%s402 + $0x14] sm:%s395]
        %415 = vst [vmem:[%s403 + $0x5] sm:%s395] %v414
        %v416 = vld [vmem:[%s402 + $0x18] sm:%s395]
        %417 = vst [vmem:[%s403 + $0x6] sm:%s395] %v416
        %v418 = vld [vmem:[%s402 + $0x1c] sm:%s395]
        %419 = vst [vmem:[%s403 + $0x7] sm:%s395] %v418
      $region188: #{complex_rot_forward.1} parent=175 // loop_footer
        %s401 = sadd.s32 1, %s397
      $region189: #{complex_rot_forward.1} parent=175 // loop_footer_branch
        %396 = sbr.rel target = $region185
      $region190: #{complex_rot_forward.1} parent=175 // loop_exit
        _
    $region176: #{complex_rot_forward.1} parent=160 // pred_fallthru
      _
  $region161: #{complex_rot_forward.1} parent=0 // pred_fallthru
    _
  // Predicated region
  $region162: #{complex_rot_forward.1} parent=0 // pred_check
    %p349 = pneg %p345
  $region163: #{complex_rot_forward.1} parent=0 // pred_check_branch
    %351 = sbr.rel (%p349) target = $region165
  $region164: #{complex_rot_forward.1} parent=0 // pred_region
    %s352 = sshllo.u32 0, 1
    loop: start=0, step=1, limit=1
    $region166: #{complex_rot_forward.1} parent=164 // loop_pre_header
      _
    $region167: #{complex_rot_forward.1} parent=164 // loop_header
      %s354 = sphi 0, %s358
      %p355 = scmp.ge.s32.totalorder %s354, 1
      %s359 = sphi %s341, %s341
      %s360 = sphi %s342, %s342
    $region168: #{complex_rot_forward.1} parent=164 // loop_header_branch
      %357 = sbr.rel (%p355) target = $region172
    $region169: #{complex_rot_forward.1} parent=164 // loop_body
      %v361 = vld [vmem:[%s359] sm:%s352]
      %362 = vst [vmem:[%s360] sm:%s352] %v361
      %v363 = vld [vmem:[%s359 + $0x4] sm:%s352]
      %364 = vst [vmem:[%s360 + $0x1] sm:%s352] %v363
      %v365 = vld [vmem:[%s359 + $0x8] sm:%s352]
      %366 = vst [vmem:[%s360 + $0x2] sm:%s352] %v365
      %v367 = vld [vmem:[%s359 + $0xc] sm:%s352]
      %368 = vst [vmem:[%s360 + $0x3] sm:%s352] %v367
      %v369 = vld [vmem:[%s359 + $0x10] sm:%s352]
      %370 = vst [vmem:[%s360 + $0x4] sm:%s352] %v369
      %v371 = vld [vmem:[%s359 + $0x14] sm:%s352]
      %372 = vst [vmem:[%s360 + $0x5] sm:%s352] %v371
      %v373 = vld [vmem:[%s359 + $0x18] sm:%s352]
      %374 = vst [vmem:[%s360 + $0x6] sm:%s352] %v373
      %v375 = vld [vmem:[%s359 + $0x1c] sm:%s352]
      %376 = vst [vmem:[%s360 + $0x7] sm:%s352] %v375
    $region170: #{complex_rot_forward.1} parent=164 // loop_footer
      %s358 = sadd.s32 1, %s354
    $region171: #{complex_rot_forward.1} parent=164 // loop_footer_branch
      %353 = sbr.rel target = $region167
    $region172: #{complex_rot_forward.1} parent=164 // loop_exit
      _
  $region165: #{complex_rot_forward.1} parent=0 // pred_fallthru
    _
  // Predicated region
  $region191: #{complex_rot_forward.1} parent=0 // pred_check
    _
  $region192: #{complex_rot_forward.1} parent=0 // pred_check_branch
    %422 = sbr.rel (0) target = $region194
  $region193: #{complex_rot_forward.1} parent=0 // pred_region
    %423 = vsyncadd %s343, 128
  $region194: #{complex_rot_forward.1} parent=0 // pred_fallthru
    _
  %s424 = scalar_lea.vmem %s0, 34
  %s425 = scalar_lea.vmem [#allocation2], 40
  %s426 = scalar_lea.sflag [#allocation3], 5
  %p428 = scmp.lt.u32.totalorder 1, 8
  %p429 = pneg %p428
  // Predicated region
  $region195: #{complex_rot_forward.1} parent=0 // pred_check
    _
  $region196: #{complex_rot_forward.1} parent=0 // pred_check_branch
    %431 = sbr.rel (%p428) target = $region198
  $region197: #{complex_rot_forward.1} parent=0 // pred_region
    %s460 = sand.u32 1, 7
    %p461 = scmp.eq.s32.totalorder %s460, 0
    %p462 = pneg %p461
    // Predicated region
    $region210: #{complex_rot_forward.1} parent=197 // pred_check
      _
    $region211: #{complex_rot_forward.1} parent=197 // pred_check_branch
      %464 = sbr.rel (%p461) target = $region213
    $region212: #{complex_rot_forward.1} parent=197 // pred_region
      %s465 = sand.u32 1, 7
      %s466 = ssub.s32 1, %s465
      %s467 = scalar_lea.vmem %s424, %s466
      %s468 = ssub.s32 1, %s465
      %s469 = scalar_lea.vmem %s425, %s468 [#allocation2]
      loop: start=0, step=1, limit=1
      $region214: #{complex_rot_forward.1} parent=212 // loop_pre_header
        _
      $region215: #{complex_rot_forward.1} parent=212 // loop_header
        %s471 = sphi 0, %s475
        %p472 = scmp.ge.s32.totalorder %s471, 1
        %s476 = sphi %s424, %s424
        %s477 = sphi %s425, %s425
      $region216: #{complex_rot_forward.1} parent=212 // loop_header_branch
        %474 = sbr.rel (%p472) target = $region220
      $region217: #{complex_rot_forward.1} parent=212 // loop_body
        _
      $region218: #{complex_rot_forward.1} parent=212 // loop_footer
        %s475 = sadd.s32 1, %s471
      $region219: #{complex_rot_forward.1} parent=212 // loop_footer_branch
        %470 = sbr.rel target = $region215
      $region220: #{complex_rot_forward.1} parent=212 // loop_exit
        _
      %s478 = sshllo.u32 0, %s465
      loop: start=0, step=1, limit=1
      $region221: #{complex_rot_forward.1} parent=212 // loop_pre_header
        _
      $region222: #{complex_rot_forward.1} parent=212 // loop_header
        %s480 = sphi 0, %s484
        %p481 = scmp.ge.s32.totalorder %s480, 1
        %s485 = sphi %s467, %s467
        %s486 = sphi %s469, %s469
      $region223: #{complex_rot_forward.1} parent=212 // loop_header_branch
        %483 = sbr.rel (%p481) target = $region227
      $region224: #{complex_rot_forward.1} parent=212 // loop_body
        %v487 = vld [vmem:[%s485] sm:%s478]
        %488 = vst [vmem:[%s486] sm:%s478] %v487
        %v489 = vld [vmem:[%s485 + $0x4] sm:%s478]
        %490 = vst [vmem:[%s486 + $0x1] sm:%s478] %v489
        %v491 = vld [vmem:[%s485 + $0x8] sm:%s478]
        %492 = vst [vmem:[%s486 + $0x2] sm:%s478] %v491
        %v493 = vld [vmem:[%s485 + $0xc] sm:%s478]
        %494 = vst [vmem:[%s486 + $0x3] sm:%s478] %v493
        %v495 = vld [vmem:[%s485 + $0x10] sm:%s478]
        %496 = vst [vmem:[%s486 + $0x4] sm:%s478] %v495
        %v497 = vld [vmem:[%s485 + $0x14] sm:%s478]
        %498 = vst [vmem:[%s486 + $0x5] sm:%s478] %v497
        %v499 = vld [vmem:[%s485 + $0x18] sm:%s478]
        %500 = vst [vmem:[%s486 + $0x6] sm:%s478] %v499
        %v501 = vld [vmem:[%s485 + $0x1c] sm:%s478]
        %502 = vst [vmem:[%s486 + $0x7] sm:%s478] %v501
      $region225: #{complex_rot_forward.1} parent=212 // loop_footer
        %s484 = sadd.s32 1, %s480
      $region226: #{complex_rot_forward.1} parent=212 // loop_footer_branch
        %479 = sbr.rel target = $region222
      $region227: #{complex_rot_forward.1} parent=212 // loop_exit
        _
    $region213: #{complex_rot_forward.1} parent=197 // pred_fallthru
      _
  $region198: #{complex_rot_forward.1} parent=0 // pred_fallthru
    _
  // Predicated region
  $region199: #{complex_rot_forward.1} parent=0 // pred_check
    %p432 = pneg %p428
  $region200: #{complex_rot_forward.1} parent=0 // pred_check_branch
    %434 = sbr.rel (%p432) target = $region202
  $region201: #{complex_rot_forward.1} parent=0 // pred_region
    %s435 = sshllo.u32 0, 1
    loop: start=0, step=1, limit=1
    $region203: #{complex_rot_forward.1} parent=201 // loop_pre_header
      _
    $region204: #{complex_rot_forward.1} parent=201 // loop_header
      %s437 = sphi 0, %s441
      %p438 = scmp.ge.s32.totalorder %s437, 1
      %s442 = sphi %s424, %s424
      %s443 = sphi %s425, %s425
    $region205: #{complex_rot_forward.1} parent=201 // loop_header_branch
      %440 = sbr.rel (%p438) target = $region209
    $region206: #{complex_rot_forward.1} parent=201 // loop_body
      %v444 = vld [vmem:[%s442] sm:%s435]
      %445 = vst [vmem:[%s443] sm:%s435] %v444
      %v446 = vld [vmem:[%s442 + $0x4] sm:%s435]
      %447 = vst [vmem:[%s443 + $0x1] sm:%s435] %v446
      %v448 = vld [vmem:[%s442 + $0x8] sm:%s435]
      %449 = vst [vmem:[%s443 + $0x2] sm:%s435] %v448
      %v450 = vld [vmem:[%s442 + $0xc] sm:%s435]
      %451 = vst [vmem:[%s443 + $0x3] sm:%s435] %v450
      %v452 = vld [vmem:[%s442 + $0x10] sm:%s435]
      %453 = vst [vmem:[%s443 + $0x4] sm:%s435] %v452
      %v454 = vld [vmem:[%s442 + $0x14] sm:%s435]
      %455 = vst [vmem:[%s443 + $0x5] sm:%s435] %v454
      %v456 = vld [vmem:[%s442 + $0x18] sm:%s435]
      %457 = vst [vmem:[%s443 + $0x6] sm:%s435] %v456
      %v458 = vld [vmem:[%s442 + $0x1c] sm:%s435]
      %459 = vst [vmem:[%s443 + $0x7] sm:%s435] %v458
    $region207: #{complex_rot_forward.1} parent=201 // loop_footer
      %s441 = sadd.s32 1, %s437
    $region208: #{complex_rot_forward.1} parent=201 // loop_footer_branch
      %436 = sbr.rel target = $region204
    $region209: #{complex_rot_forward.1} parent=201 // loop_exit
      _
  $region202: #{complex_rot_forward.1} parent=0 // pred_fallthru
    _
  // Predicated region
  $region228: #{complex_rot_forward.1} parent=0 // pred_check
    _
  $region229: #{complex_rot_forward.1} parent=0 // pred_check_branch
    %505 = sbr.rel (0) target = $region231
  $region230: #{complex_rot_forward.1} parent=0 // pred_region
    %506 = vsyncadd %s426, 128
  $region231: #{complex_rot_forward.1} parent=0 // pred_fallthru
    _
  %s507 = smul.u32 8, 1
  %s508 = sshll.u32 %s507, 4
  %509 = dma.done [#allocation3], %s508
  %s510 = sshll.u32 %s507, 4
  %511 = dma.done %s94, %s510
  %s512 = sshll.u32 %s507, 4
  %513 = dma.done %s177, %s512
  %s514 = sshll.u32 %s507, 4
  %515 = dma.done %s260, %s514
  %s516 = sshll.u32 %s507, 4
  %517 = dma.done %s343, %s516
  %s518 = sshll.u32 %s507, 4
  %519 = dma.done %s426, %s518
  %v520 = vld [vmem:[#allocation2] sm:$0xff]
  %v521 = vld [vmem:[#allocation2 + $0x8] sm:$0xff]
  %v522 = vld [vmem:[#allocation2 + $0x10] sm:$0xff]
  %v523 = vld [vmem:[#allocation2 + $0x18] sm:$0xff]
  %v524 = vld [vmem:[#allocation2 + $0x20] sm:$0xff]
  %v525 = vld [vmem:[#allocation2 + $0x28] sm:$0xff]
  %v526 = vld [vmem:[%s1] sm:$0xff]
  %v527 = vld [vmem:[%s1 + $0x8] sm:$0xff]
  %vm528 = vcmask 64512
  %v530 = vsel %vm528, %v526, 0
  %v533 = vsel %vm528, %v527, 0
  %535 = vmatprep.subr.mxu0 %v521
  %536 = vmatpush1.msra.mxu0 %v520
  %537 = vmatprep.subr.mxu0 0.0
  %538 = vmatpush1.msra.mxu0 0.0
  %539 = vmatprep.subr.mxu0 0.0
  %540 = vmatpush1.msra.mxu0 0.0
  %541 = vmatprep.subr.mxu0 0.0
  %542 = vmatpush1.msra.mxu0 0.0
  %543 = vmatprep.subr.mxu0 0.0
  %544 = vmatpush1.msra.mxu0 0.0
  %545 = vmatprep.subr.mxu0 0.0
  %546 = vmatpush1.msra.mxu0 0.0
  %547 = vmatprep.subr.mxu0 0.0
  %548 = vmatpush1.msra.mxu0 0.0
  %549 = vmatprep.subr.mxu0 0.0
  %550 = vmatpush1.msra.mxu0 0.0
  %551 = vmatprep.subr.mxu0 0.0
  %552 = vmatpush1.msra.mxu0 0.0
  %553 = vmatprep.subr.mxu0 0.0
  %554 = vmatpush1.msra.mxu0 0.0
  %555 = vmatprep.subr.mxu0 0.0
  %556 = vmatpush1.msra.mxu0 0.0
  %557 = vmatprep.subr.mxu0 0.0
  %558 = vmatpush1.msra.mxu0 0.0
  %559 = vmatprep.subr.mxu0 0.0
  %560 = vmatpush1.msra.mxu0 0.0
  %561 = vmatprep.subr.mxu0 0.0
  %562 = vmatpush1.msra.mxu0 0.0
  %563 = vmatprep.subr.mxu0 0.0
  %564 = vmatpush1.msra.mxu0 0.0
  %565 = vmatprep.subr.mxu0 0.0
  %566 = vmatpush1.msra.mxu0 0.0
  %567 = vmatprep.subr.mxu0 0.0
  %568 = vmatpush1.msra.mxu0 0.0
  %569 = vmatprep.subr.mxu0 0.0
  %570 = vmatpush1.msra.mxu0 0.0
  %571 = vmatprep.subr.mxu0 0.0
  %572 = vmatpush1.msra.mxu0 0.0
  %573 = vmatprep.subr.mxu0 0.0
  %574 = vmatpush1.msra.mxu0 0.0
  %575 = vmatprep.subr.mxu0 0.0
  %576 = vmatpush1.msra.mxu0 0.0
  %577 = vmatprep.subr.mxu0 0.0
  %578 = vmatpush1.msra.mxu0 0.0
  %579 = vmatprep.subr.mxu0 0.0
  %580 = vmatpush1.msra.mxu0 0.0
  %581 = vmatprep.subr.mxu0 0.0
  %582 = vmatpush1.msra.mxu0 0.0
  %583 = vmatprep.subr.mxu0 0.0
  %584 = vmatpush1.msra.mxu0 0.0
  %585 = vmatprep.subr.mxu0 0.0
  %586 = vmatpush1.msra.mxu0 0.0
  %587 = vmatprep.subr.mxu0 0.0
  %588 = vmatpush1.msra.mxu0 0.0
  %589 = vmatprep.subr.mxu0 0.0
  %590 = vmatpush1.msra.mxu0 0.0
  %591 = vmatprep.subr.mxu0 0.0
  %592 = vmatpush1.msra.mxu0 0.0
  %593 = vmatprep.subr.mxu0 0.0
  %594 = vmatpush1.msra.mxu0 0.0
  %595 = vmatprep.subr.mxu0 0.0
  %596 = vmatpush1.msra.mxu0 0.0
  %597 = vmatprep.subr.mxu0 0.0
  %598 = vmatpush1.msra.mxu0 0.0
  %599 = vmatprep.mubr.f32.mxu0 0.0
  %600 = vmatmul.mubr.f32.gmra.mrb[0].mxu0 %v530
  %v601 = vpop.f32.mrb[0].mxu0
  %v602 = vadd.f32 0.0, %v601
  %v603 = vpop.f32.mrb[0].mxu0
  %v604 = vadd.f32 0.0, %v603
  %605 = vmatprep.mubr.f32.mxu0 0.0
  %606 = vmatmul.mubr.f32.gmra.mrb[0].mxu0 %v533
  %v607 = vpop.f32.mrb[0].mxu0
  %v608 = vadd.f32 0.0, %v607
  %v609 = vpop.f32.mrb[0].mxu0
  %v610 = vadd.f32 0.0, %v609
  %611 = vdwg.mxu0
  %612 = vmatprep.subr.mxu0 %v523
  %613 = vmatpush1.msra.mxu0 %v522
  %614 = vmatprep.subr.mxu0 0.0
  %615 = vmatpush1.msra.mxu0 0.0
  %616 = vmatprep.subr.mxu0 0.0
  %617 = vmatpush1.msra.mxu0 0.0
  %618 = vmatprep.subr.mxu0 0.0
  %619 = vmatpush1.msra.mxu0 0.0
  %620 = vmatprep.subr.mxu0 0.0
  %621 = vmatpush1.msra.mxu0 0.0
  %622 = vmatprep.subr.mxu0 0.0
  %623 = vmatpush1.msra.mxu0 0.0
  %624 = vmatprep.subr.mxu0 0.0
  %625 = vmatpush1.msra.mxu0 0.0
  %626 = vmatprep.subr.mxu0 0.0
  %627 = vmatpush1.msra.mxu0 0.0
  %628 = vmatprep.subr.mxu0 0.0
  %629 = vmatpush1.msra.mxu0 0.0
  %630 = vmatprep.subr.mxu0 0.0
  %631 = vmatpush1.msra.mxu0 0.0
  %632 = vmatprep.subr.mxu0 0.0
  %633 = vmatpush1.msra.mxu0 0.0
  %634 = vmatprep.subr.mxu0 0.0
  %635 = vmatpush1.msra.mxu0 0.0
  %636 = vmatprep.subr.mxu0 0.0
  %637 = vmatpush1.msra.mxu0 0.0
  %638 = vmatprep.subr.mxu0 0.0
  %639 = vmatpush1.msra.mxu0 0.0
  %640 = vmatprep.subr.mxu0 0.0
  %641 = vmatpush1.msra.mxu0 0.0
  %642 = vmatprep.subr.mxu0 0.0
  %643 = vmatpush1.msra.mxu0 0.0
  %644 = vmatprep.subr.mxu0 0.0
  %645 = vmatpush1.msra.mxu0 0.0
  %646 = vmatprep.subr.mxu0 0.0
  %647 = vmatpush1.msra.mxu0 0.0
  %648 = vmatprep.subr.mxu0 0.0
  %649 = vmatpush1.msra.mxu0 0.0
  %650 = vmatprep.subr.mxu0 0.0
  %651 = vmatpush1.msra.mxu0 0.0
  %652 = vmatprep.subr.mxu0 0.0
  %653 = vmatpush1.msra.mxu0 0.0
  %654 = vmatprep.subr.mxu0 0.0
  %655 = vmatpush1.msra.mxu0 0.0
  %656 = vmatprep.subr.mxu0 0.0
  %657 = vmatpush1.msra.mxu0 0.0
  %658 = vmatprep.subr.mxu0 0.0
  %659 = vmatpush1.msra.mxu0 0.0
  %660 = vmatprep.subr.mxu0 0.0
  %661 = vmatpush1.msra.mxu0 0.0
  %662 = vmatprep.subr.mxu0 0.0
  %663 = vmatpush1.msra.mxu0 0.0
  %664 = vmatprep.subr.mxu0 0.0
  %665 = vmatpush1.msra.mxu0 0.0
  %666 = vmatprep.subr.mxu0 0.0
  %667 = vmatpush1.msra.mxu0 0.0
  %668 = vmatprep.subr.mxu0 0.0
  %669 = vmatpush1.msra.mxu0 0.0
  %670 = vmatprep.subr.mxu0 0.0
  %671 = vmatpush1.msra.mxu0 0.0
  %672 = vmatprep.subr.mxu0 0.0
  %673 = vmatpush1.msra.mxu0 0.0
  %674 = vmatprep.subr.mxu0 0.0
  %675 = vmatpush1.msra.mxu0 0.0
  %676 = vmatprep.mubr.f32.mxu0 0.0
  %677 = vmatmul.mubr.f32.gmra.mrb[0].mxu0 %v530
  %v678 = vpop.f32.mrb[0].mxu0
  %v679 = vadd.f32 0.0, %v678
  %v680 = vpop.f32.mrb[0].mxu0
  %v681 = vadd.f32 0.0, %v680
  %682 = vmatprep.mubr.f32.mxu0 0.0
  %683 = vmatmul.mubr.f32.gmra.mrb[0].mxu0 %v533
  %v684 = vpop.f32.mrb[0].mxu0
  %v685 = vadd.f32 0.0, %v684
  %v686 = vpop.f32.mrb[0].mxu0
  %v687 = vadd.f32 0.0, %v686
  %688 = vdwg.mxu0
  %689 = vmatprep.subr.mxu0 %v525
  %690 = vmatpush1.msra.mxu0 %v524
  %691 = vmatprep.subr.mxu0 0.0
  %692 = vmatpush1.msra.mxu0 0.0
  %693 = vmatprep.subr.mxu0 0.0
  %694 = vmatpush1.msra.mxu0 0.0
  %695 = vmatprep.subr.mxu0 0.0
  %696 = vmatpush1.msra.mxu0 0.0
  %697 = vmatprep.subr.mxu0 0.0
  %698 = vmatpush1.msra.mxu0 0.0
  %699 = vmatprep.subr.mxu0 0.0
  %700 = vmatpush1.msra.mxu0 0.0
  %701 = vmatprep.subr.mxu0 0.0
  %702 = vmatpush1.msra.mxu0 0.0
  %703 = vmatprep.subr.mxu0 0.0
  %704 = vmatpush1.msra.mxu0 0.0
  %705 = vmatprep.subr.mxu0 0.0
  %706 = vmatpush1.msra.mxu0 0.0
  %707 = vmatprep.subr.mxu0 0.0
  %708 = vmatpush1.msra.mxu0 0.0
  %709 = vmatprep.subr.mxu0 0.0
  %710 = vmatpush1.msra.mxu0 0.0
  %711 = vmatprep.subr.mxu0 0.0
  %712 = vmatpush1.msra.mxu0 0.0
  %713 = vmatprep.subr.mxu0 0.0
  %714 = vmatpush1.msra.mxu0 0.0
  %715 = vmatprep.subr.mxu0 0.0
  %716 = vmatpush1.msra.mxu0 0.0
  %717 = vmatprep.subr.mxu0 0.0
  %718 = vmatpush1.msra.mxu0 0.0
  %719 = vmatprep.subr.mxu0 0.0
  %720 = vmatpush1.msra.mxu0 0.0
  %721 = vmatprep.subr.mxu0 0.0
  %722 = vmatpush1.msra.mxu0 0.0
  %723 = vmatprep.subr.mxu0 0.0
  %724 = vmatpush1.msra.mxu0 0.0
  %725 = vmatprep.subr.mxu0 0.0
  %726 = vmatpush1.msra.mxu0 0.0
  %727 = vmatprep.subr.mxu0 0.0
  %728 = vmatpush1.msra.mxu0 0.0
  %729 = vmatprep.subr.mxu0 0.0
  %730 = vmatpush1.msra.mxu0 0.0
  %731 = vmatprep.subr.mxu0 0.0
  %732 = vmatpush1.msra.mxu0 0.0
  %733 = vmatprep.subr.mxu0 0.0
  %734 = vmatpush1.msra.mxu0 0.0
  %735 = vmatprep.subr.mxu0 0.0
  %736 = vmatpush1.msra.mxu0 0.0
  %737 = vmatprep.subr.mxu0 0.0
  %738 = vmatpush1.msra.mxu0 0.0
  %739 = vmatprep.subr.mxu0 0.0
  %740 = vmatpush1.msra.mxu0 0.0
  %741 = vmatprep.subr.mxu0 0.0
  %742 = vmatpush1.msra.mxu0 0.0
  %743 = vmatprep.subr.mxu0 0.0
  %744 = vmatpush1.msra.mxu0 0.0
  %745 = vmatprep.subr.mxu0 0.0
  %746 = vmatpush1.msra.mxu0 0.0
  %747 = vmatprep.subr.mxu0 0.0
  %748 = vmatpush1.msra.mxu0 0.0
  %749 = vmatprep.subr.mxu0 0.0
  %750 = vmatpush1.msra.mxu0 0.0
  %751 = vmatprep.subr.mxu0 0.0
  %752 = vmatpush1.msra.mxu0 0.0
  %753 = vmatprep.mubr.f32.mxu0 0.0
  %754 = vmatmul.mubr.f32.gmra.mrb[0].mxu0 %v530
  %v755 = vpop.f32.mrb[0].mxu0
  %v756 = vadd.f32 0.0, %v755
  %v757 = vpop.f32.mrb[0].mxu0
  %v758 = vadd.f32 0.0, %v757
  %759 = vmatprep.mubr.f32.mxu0 0.0
  %760 = vmatmul.mubr.f32.gmra.mrb[0].mxu0 %v533
  %v761 = vpop.f32.mrb[0].mxu0
  %v762 = vadd.f32 0.0, %v761
  %v763 = vpop.f32.mrb[0].mxu0
  %v764 = vadd.f32 0.0, %v763
  %765 = vdwg.mxu0
  %v766 = vmul.f32 %v602, %v602
  %v767 = vmul.f32 %v604, %v604
  %v768 = vmul.f32 %v679, %v679
  %v769 = vmul.f32 %v681, %v681
  %v770 = vmul.f32 %v756, %v756
  %v771 = vmul.f32 %v758, %v758
  %v772 = vmul.f32 %v608, %v608
  %v773 = vmul.f32 %v610, %v610
  %v774 = vmul.f32 %v685, %v685
  %v775 = vmul.f32 %v687, %v687
  %v776 = vmul.f32 %v762, %v762
  %v777 = vmul.f32 %v764, %v764
  %v778 = vadd.f32 %v766, %v768
  %v779 = vadd.f32 %v767, %v769
  %v780 = vadd.f32 %v778, %v770
  %v781 = vadd.f32 %v779, %v771
  %v782 = vadd.f32 %v772, %v774
  %v783 = vadd.f32 %v773, %v775
  %v784 = vadd.f32 %v782, %v776
  %v785 = vadd.f32 %v783, %v777
  %v786 = vmul.f32 %v602, %v608
  %v787 = vmul.f32 %v604, %v610
  %v788 = vmul.f32 %v679, %v685
  %v789 = vmul.f32 %v681, %v687
  %v790 = vmul.f32 %v756, %v762
  %v791 = vmul.f32 %v758, %v764
  %v792 = vadd.f32 %v786, %v788
  %v793 = vadd.f32 %v787, %v789
  %v794 = vadd.f32 %v792, %v790
  %v795 = vadd.f32 %v793, %v791
  %v796 = vrsqrt.pop %v780
  %v797 = vmul.f32 %v780, %v796
  %vm798 = vcmp.eq.f32.partialorder %v780, inf
  %v799 = vsel %vm798, %v780, %v797
  %vm800 = vcmp.eq.f32.partialorder %v780, 0.0
  %v801 = vand.u32 %v780, 2147483648
  %v802 = vsel %vm800, %v801, %v799
  %v803 = vrsqrt.pop %v781
  %v804 = vmul.f32 %v781, %v803
  %vm805 = vcmp.eq.f32.partialorder %v781, inf
  %v806 = vsel %vm805, %v781, %v804
  %vm807 = vcmp.eq.f32.partialorder %v781, 0.0
  %v808 = vand.u32 %v781, 2147483648
  %v809 = vsel %vm807, %v808, %v806
  %v810 = vadd.f32 %v802, 1e-06
  %v811 = vadd.f32 %v809, 1e-06
  %v812 = vmul.f32 %v810, %v810
  %v813 = vmul.f32 %v811, %v811
  %v814 = vadd.f32 %v810, %v811
  %815 = vadd.xlane.f32.xlu0 %v814
  %v816 = vpop.xlane.xlu0 %815
  %v817 = vrcp.pop 256.0
  %v818 = vmul.f32 %v816, %v817
  %v819 = vadd.f32 %v812, %v813
  %820 = vadd.xlane.f32.xlu0 %v819
  %v821 = vpop.xlane.xlu0 %820
  %v822 = vmul.f32 %v821, %v817
  %v823 = vmul.f32 %v818, %v818
  %v824 = vsub.f32 %v822, %v823
  %v825 = vsub.f32 %v810, %v818
  %v826 = vsub.f32 %v811, %v818
  %v827 = vadd.f32 %v824, 1e-05
  %v828 = vmul.f32 %v827, %v812
  %v829 = vmul.f32 %v827, %v813
  %v830 = vrsqrt.pop %v828
  %v831 = vrsqrt.pop %v829
  %v832 = vmul.f32 %v825, %v830
  %v833 = vmul.f32 %v826, %v831
  %v834 = vmul.f32 %v794, %v832
  %v835 = vmul.f32 %v795, %v833
  %v836 = vmin.f32 %v834, 0.0
  %v837 = vmin.f32 %v835, 0.0
  %v838 = vadd.f32 %v784, 1e-06
  %v839 = vadd.f32 %v785, 1e-06
  %v840 = vrcp.pop %v838
  %v841 = vrcp.pop %v839
  %v842 = vmul.f32 %v836, %v840
  %v843 = vmul.f32 %v837, %v841
  %v844 = vmul.f32 %v602, %v832
  %v845 = vmul.f32 %v604, %v833
  %v846 = vmul.f32 %v842, %v608
  %v847 = vmul.f32 %v843, %v610
  %v848 = vsub.f32 %v844, %v846
  %v849 = vsub.f32 %v845, %v847
  %v850 = vmul.f32 %v679, %v832
  %v851 = vmul.f32 %v681, %v833
  %v852 = vmul.f32 %v842, %v685
  %v853 = vmul.f32 %v843, %v687
  %v854 = vsub.f32 %v850, %v852
  %v855 = vsub.f32 %v851, %v853
  %v856 = vmul.f32 %v756, %v832
  %v857 = vmul.f32 %v758, %v833
  %v858 = vmul.f32 %v842, %v762
  %v859 = vmul.f32 %v843, %v764
  %v860 = vsub.f32 %v856, %v858
  %v861 = vsub.f32 %v857, %v859
  %s862 = scalar_lea.vmem %s1, 16
  %v863 = vld [vmem:[%s862] sm:$0xff]
  %v865 = vsel %vm528, %v863, 0
  %867 = vmatprep.subr.mxu0 %v849
  %868 = vmatpush1.msra.mxu0 %v848
  %869 = vmatprep.subr.mxu0 0.0
  %870 = vmatpush1.msra.mxu0 0.0
  %871 = vmatprep.subr.mxu0 0.0
  %872 = vmatpush1.msra.mxu0 0.0
  %873 = vmatprep.subr.mxu0 0.0
  %874 = vmatpush1.msra.mxu0 0.0
  %875 = vmatprep.subr.mxu0 0.0
  %876 = vmatpush1.msra.mxu0 0.0
  %877 = vmatprep.subr.mxu0 0.0
  %878 = vmatpush1.msra.mxu0 0.0
  %879 = vmatprep.subr.mxu0 0.0
  %880 = vmatpush1.msra.mxu0 0.0
  %881 = vmatprep.subr.mxu0 0.0
  %882 = vmatpush1.msra.mxu0 0.0
  %883 = vmatprep.subr.mxu0 0.0
  %884 = vmatpush1.msra.mxu0 0.0
  %885 = vmatprep.subr.mxu0 0.0
  %886 = vmatpush1.msra.mxu0 0.0
  %887 = vmatprep.subr.mxu0 0.0
  %888 = vmatpush1.msra.mxu0 0.0
  %889 = vmatprep.subr.mxu0 0.0
  %890 = vmatpush1.msra.mxu0 0.0
  %891 = vmatprep.subr.mxu0 0.0
  %892 = vmatpush1.msra.mxu0 0.0
  %893 = vmatprep.subr.mxu0 0.0
  %894 = vmatpush1.msra.mxu0 0.0
  %895 = vmatprep.subr.mxu0 0.0
  %896 = vmatpush1.msra.mxu0 0.0
  %897 = vmatprep.subr.mxu0 0.0
  %898 = vmatpush1.msra.mxu0 0.0
  %899 = vmatprep.subr.mxu0 0.0
  %900 = vmatpush1.msra.mxu0 0.0
  %901 = vmatprep.subr.mxu0 0.0
  %902 = vmatpush1.msra.mxu0 0.0
  %903 = vmatprep.subr.mxu0 0.0
  %904 = vmatpush1.msra.mxu0 0.0
  %905 = vmatprep.subr.mxu0 0.0
  %906 = vmatpush1.msra.mxu0 0.0
  %907 = vmatprep.subr.mxu0 0.0
  %908 = vmatpush1.msra.mxu0 0.0
  %909 = vmatprep.subr.mxu0 0.0
  %910 = vmatpush1.msra.mxu0 0.0
  %911 = vmatprep.subr.mxu0 0.0
  %912 = vmatpush1.msra.mxu0 0.0
  %913 = vmatprep.subr.mxu0 0.0
  %914 = vmatpush1.msra.mxu0 0.0
  %915 = vmatprep.subr.mxu0 0.0
  %916 = vmatpush1.msra.mxu0 0.0
  %917 = vmatprep.subr.mxu0 0.0
  %918 = vmatpush1.msra.mxu0 0.0
  %919 = vmatprep.subr.mxu0 0.0
  %920 = vmatpush1.msra.mxu0 0.0
  %921 = vmatprep.subr.mxu0 0.0
  %922 = vmatpush1.msra.mxu0 0.0
  %923 = vmatprep.subr.mxu0 0.0
  %924 = vmatpush1.msra.mxu0 0.0
  %925 = vmatprep.subr.mxu0 0.0
  %926 = vmatpush1.msra.mxu0 0.0
  %927 = vmatprep.subr.mxu0 0.0
  %928 = vmatpush1.msra.mxu0 0.0
  %929 = vmatprep.subr.mxu0 0.0
  %930 = vmatpush1.msra.mxu0 0.0
  %931 = vmatprep.mubr.f32.mxu0 0.0
  %932 = vmatmul.mubr.f32.gmra.mrb[0].mxu0 %v865
  %v933 = vpop.f32.mrb[0].mxu0
  %v934 = vadd.f32 0.0, %v933
  %v935 = vpop.f32.mrb[0].mxu0
  %v936 = vadd.f32 0.0, %v935
  %937 = vdwg.mxu0
  %938 = vmatprep.subr.mxu0 %v855
  %939 = vmatpush1.msra.mxu0 %v854
  %940 = vmatprep.subr.mxu0 0.0
  %941 = vmatpush1.msra.mxu0 0.0
  %942 = vmatprep.subr.mxu0 0.0
  %943 = vmatpush1.msra.mxu0 0.0
  %944 = vmatprep.subr.mxu0 0.0
  %945 = vmatpush1.msra.mxu0 0.0
  %946 = vmatprep.subr.mxu0 0.0
  %947 = vmatpush1.msra.mxu0 0.0
  %948 = vmatprep.subr.mxu0 0.0
  %949 = vmatpush1.msra.mxu0 0.0
  %950 = vmatprep.subr.mxu0 0.0
  %951 = vmatpush1.msra.mxu0 0.0
  %952 = vmatprep.subr.mxu0 0.0
  %953 = vmatpush1.msra.mxu0 0.0
  %954 = vmatprep.subr.mxu0 0.0
  %955 = vmatpush1.msra.mxu0 0.0
  %956 = vmatprep.subr.mxu0 0.0
  %957 = vmatpush1.msra.mxu0 0.0
  %958 = vmatprep.subr.mxu0 0.0
  %959 = vmatpush1.msra.mxu0 0.0
  %960 = vmatprep.subr.mxu0 0.0
  %961 = vmatpush1.msra.mxu0 0.0
  %962 = vmatprep.subr.mxu0 0.0
  %963 = vmatpush1.msra.mxu0 0.0
  %964 = vmatprep.subr.mxu0 0.0
  %965 = vmatpush1.msra.mxu0 0.0
  %966 = vmatprep.subr.mxu0 0.0
  %967 = vmatpush1.msra.mxu0 0.0
  %968 = vmatprep.subr.mxu0 0.0
  %969 = vmatpush1.msra.mxu0 0.0
  %970 = vmatprep.subr.mxu0 0.0
  %971 = vmatpush1.msra.mxu0 0.0
  %972 = vmatprep.subr.mxu0 0.0
  %973 = vmatpush1.msra.mxu0 0.0
  %974 = vmatprep.subr.mxu0 0.0
  %975 = vmatpush1.msra.mxu0 0.0
  %976 = vmatprep.subr.mxu0 0.0
  %977 = vmatpush1.msra.mxu0 0.0
  %978 = vmatprep.subr.mxu0 0.0
  %979 = vmatpush1.msra.mxu0 0.0
  %980 = vmatprep.subr.mxu0 0.0
  %981 = vmatpush1.msra.mxu0 0.0
  %982 = vmatprep.subr.mxu0 0.0
  %983 = vmatpush1.msra.mxu0 0.0
  %984 = vmatprep.subr.mxu0 0.0
  %985 = vmatpush1.msra.mxu0 0.0
  %986 = vmatprep.subr.mxu0 0.0
  %987 = vmatpush1.msra.mxu0 0.0
  %988 = vmatprep.subr.mxu0 0.0
  %989 = vmatpush1.msra.mxu0 0.0
  %990 = vmatprep.subr.mxu0 0.0
  %991 = vmatpush1.msra.mxu0 0.0
  %992 = vmatprep.subr.mxu0 0.0
  %993 = vmatpush1.msra.mxu0 0.0
  %994 = vmatprep.subr.mxu0 0.0
  %995 = vmatpush1.msra.mxu0 0.0
  %996 = vmatprep.subr.mxu0 0.0
  %997 = vmatpush1.msra.mxu0 0.0
  %998 = vmatprep.subr.mxu0 0.0
  %999 = vmatpush1.msra.mxu0 0.0
  %1000 = vmatprep.subr.mxu0 0.0
  %1001 = vmatpush1.msra.mxu0 0.0
  %1002 = vmatprep.mubr.f32.mxu0 0.0
  %1003 = vmatmul.mubr.f32.gmra.mrb[0].mxu0 %v865
  %v1004 = vpop.f32.mrb[0].mxu0
  %v1005 = vadd.f32 0.0, %v1004
  %v1006 = vpop.f32.mrb[0].mxu0
  %v1007 = vadd.f32 0.0, %v1006
  %1008 = vdwg.mxu0
  %1009 = vmatprep.subr.mxu0 %v861
  %1010 = vmatpush1.msra.mxu0 %v860
  %1011 = vmatprep.subr.mxu0 0.0
  %1012 = vmatpush1.msra.mxu0 0.0
  %1013 = vmatprep.subr.mxu0 0.0
  %1014 = vmatpush1.msra.mxu0 0.0
  %1015 = vmatprep.subr.mxu0 0.0
  %1016 = vmatpush1.msra.mxu0 0.0
  %1017 = vmatprep.subr.mxu0 0.0
  %1018 = vmatpush1.msra.mxu0 0.0
  %1019 = vmatprep.subr.mxu0 0.0
  %1020 = vmatpush1.msra.mxu0 0.0
  %1021 = vmatprep.subr.mxu0 0.0
  %1022 = vmatpush1.msra.mxu0 0.0
  %1023 = vmatprep.subr.mxu0 0.0
  %1024 = vmatpush1.msra.mxu0 0.0
  %1025 = vmatprep.subr.mxu0 0.0
  %1026 = vmatpush1.msra.mxu0 0.0
  %1027 = vmatprep.subr.mxu0 0.0
  %1028 = vmatpush1.msra.mxu0 0.0
  %1029 = vmatprep.subr.mxu0 0.0
  %1030 = vmatpush1.msra.mxu0 0.0
  %1031 = vmatprep.subr.mxu0 0.0
  %1032 = vmatpush1.msra.mxu0 0.0
  %1033 = vmatprep.subr.mxu0 0.0
  %1034 = vmatpush1.msra.mxu0 0.0
  %1035 = vmatprep.subr.mxu0 0.0
  %1036 = vmatpush1.msra.mxu0 0.0
  %1037 = vmatprep.subr.mxu0 0.0
  %1038 = vmatpush1.msra.mxu0 0.0
  %1039 = vmatprep.subr.mxu0 0.0
  %1040 = vmatpush1.msra.mxu0 0.0
  %1041 = vmatprep.subr.mxu0 0.0
  %1042 = vmatpush1.msra.mxu0 0.0
  %1043 = vmatprep.subr.mxu0 0.0
  %1044 = vmatpush1.msra.mxu0 0.0
  %1045 = vmatprep.subr.mxu0 0.0
  %1046 = vmatpush1.msra.mxu0 0.0
  %1047 = vmatprep.subr.mxu0 0.0
  %1048 = vmatpush1.msra.mxu0 0.0
  %1049 = vmatprep.subr.mxu0 0.0
  %1050 = vmatpush1.msra.mxu0 0.0
  %1051 = vmatprep.subr.mxu0 0.0
  %1052 = vmatpush1.msra.mxu0 0.0
  %1053 = vmatprep.subr.mxu0 0.0
  %1054 = vmatpush1.msra.mxu0 0.0
  %1055 = vmatprep.subr.mxu0 0.0
  %1056 = vmatpush1.msra.mxu0 0.0
  %1057 = vmatprep.subr.mxu0 0.0
  %1058 = vmatpush1.msra.mxu0 0.0
  %1059 = vmatprep.subr.mxu0 0.0
  %1060 = vmatpush1.msra.mxu0 0.0
  %1061 = vmatprep.subr.mxu0 0.0
  %1062 = vmatpush1.msra.mxu0 0.0
  %1063 = vmatprep.subr.mxu0 0.0
  %1064 = vmatpush1.msra.mxu0 0.0
  %1065 = vmatprep.subr.mxu0 0.0
  %1066 = vmatpush1.msra.mxu0 0.0
  %1067 = vmatprep.subr.mxu0 0.0
  %1068 = vmatpush1.msra.mxu0 0.0
  %1069 = vmatprep.subr.mxu0 0.0
  %1070 = vmatpush1.msra.mxu0 0.0
  %1071 = vmatprep.subr.mxu0 0.0
  %1072 = vmatpush1.msra.mxu0 0.0
  %1073 = vmatprep.mubr.f32.mxu0 0.0
  %1074 = vmatmul.mubr.f32.gmra.mrb[0].mxu0 %v865
  %v1075 = vpop.f32.mrb[0].mxu0
  %v1076 = vadd.f32 0.0, %v1075
  %v1077 = vpop.f32.mrb[0].mxu0
  %v1078 = vadd.f32 0.0, %v1077
  %1079 = vdwg.mxu0
  %v1080 = vmul.f32 %v934, %v934
  %v1081 = vmul.f32 %v936, %v936
  %v1082 = vmul.f32 %v1005, %v1005
  %v1083 = vmul.f32 %v1007, %v1007
  %v1084 = vmul.f32 %v1076, %v1076
  %v1085 = vmul.f32 %v1078, %v1078
  %v1086 = vadd.f32 %v1080, %v1082
  %v1087 = vadd.f32 %v1081, %v1083
  %v1088 = vadd.f32 %v1086, %v1084
  %v1089 = vadd.f32 %v1087, %v1085
  %v1096 = vrot.slane %v934, 4
  %v1097 = vrot.slane %v936, 4
  %v1098 = vrot.slane %v1005, 4
  %v1099 = vrot.slane %v1007, 4
  %v1100 = vrot.slane %v1076, 4
  %v1101 = vrot.slane %v1078, 4
  %v1108 = vmul.f32 %v934, %v1096
  %v1109 = vmul.f32 %v936, %v1097
  %v1110 = vmul.f32 %v1005, %v1098
  %v1111 = vmul.f32 %v1007, %v1099
  %v1112 = vmul.f32 %v1076, %v1100
  %v1113 = vmul.f32 %v1078, %v1101
  %v1114 = vadd.f32 %v1108, %v1110
  %v1115 = vadd.f32 %v1109, %v1111
  %v1116 = vadd.f32 %v1114, %v1112
  %v1117 = vadd.f32 %v1115, %v1113
  %v1118 = vrsqrt.pop %v1088
  %v1119 = vmul.f32 %v1088, %v1118
  %vm1120 = vcmp.eq.f32.partialorder %v1088, inf
  %v1121 = vsel %vm1120, %v1088, %v1119
  %vm1122 = vcmp.eq.f32.partialorder %v1088, 0.0
  %v1123 = vand.u32 %v1088, 2147483648
  %v1124 = vsel %vm1122, %v1123, %v1121
  %v1125 = vrsqrt.pop %v1089
  %v1126 = vmul.f32 %v1089, %v1125
  %vm1127 = vcmp.eq.f32.partialorder %v1089, inf
  %v1128 = vsel %vm1127, %v1089, %v1126
  %vm1129 = vcmp.eq.f32.partialorder %v1089, 0.0
  %v1130 = vand.u32 %v1089, 2147483648
  %v1131 = vsel %vm1129, %v1130, %v1128
  %v1132 = vadd.f32 %v1124, 1e-06
  %v1133 = vadd.f32 %v1131, 1e-06
  %v1134 = vmul.f32 %v1132, %v1132
  %v1135 = vmul.f32 %v1133, %v1133
  %vm1136 = vcmask 1043456
  %v1137 = vsel %vm1136, %v1132, 0.0
  %v1138 = vsel %vm1136, %v1133, 0.0
  %v1139 = vadd.f32 %v1137, %v1138
  %1140 = vadd.xlane.f32.xlu0 %v1139
  %v1141 = vpop.xlane.xlu0 %1140
  %v1142 = vmul.f32 %v1141, %v817
  %v1143 = vsel %vm1136, %v1134, 0.0
  %v1144 = vsel %vm1136, %v1135, 0.0
  %v1145 = vadd.f32 %v1143, %v1144
  %1146 = vadd.xlane.f32.xlu0 %v1145
  %v1147 = vpop.xlane.xlu0 %1146
  %v1148 = vmul.f32 %v1147, %v817
  %v1149 = vmul.f32 %v1142, %v1142
  %v1150 = vsub.f32 %v1148, %v1149
  %v1151 = vsub.f32 %v1132, %v1142
  %v1152 = vsub.f32 %v1133, %v1142
  %v1153 = vadd.f32 %v1150, 1e-05
  %v1154 = vmul.f32 %v1153, %v1134
  %v1155 = vmul.f32 %v1153, %v1135
  %v1156 = vrsqrt.pop %v1154
  %v1157 = vrsqrt.pop %v1155
  %v1158 = vmul.f32 %v1151, %v1156
  %v1159 = vmul.f32 %v1152, %v1157
  %v1160 = vmul.f32 %v1116, %v1158
  %v1161 = vmul.f32 %v1117, %v1159
  %v1162 = vmin.f32 %v1160, 0.0
  %v1163 = vmin.f32 %v1161, 0.0
  %v1164 = vadd.f32 %v1088, 1e-06
  %v1165 = vadd.f32 %v1089, 1e-06
  %v1166 = vrcp.pop %v1164
  %v1167 = vrcp.pop %v1165
  %v1170 = vrot.slane %v1166, 4
  %v1171 = vrot.slane %v1167, 4
  %v1174 = vmul.f32 %v1162, %v1170
  %v1175 = vmul.f32 %v1163, %v1171
  %v1176 = vmul.f32 %v934, %v1158
  %v1177 = vmul.f32 %v936, %v1159
  %v1178 = vmul.f32 %v1174, %v1096
  %v1179 = vmul.f32 %v1175, %v1097
  %v1180 = vsub.f32 %v1176, %v1178
  %v1181 = vsub.f32 %v1177, %v1179
  %v1182 = vmul.f32 %v1005, %v1158
  %v1183 = vmul.f32 %v1007, %v1159
  %v1184 = vmul.f32 %v1174, %v1098
  %v1185 = vmul.f32 %v1175, %v1099
  %v1186 = vsub.f32 %v1182, %v1184
  %v1187 = vsub.f32 %v1183, %v1185
  %v1188 = vmul.f32 %v1076, %v1158
  %v1189 = vmul.f32 %v1078, %v1159
  %v1190 = vmul.f32 %v1174, %v1100
  %v1191 = vmul.f32 %v1175, %v1101
  %v1192 = vsub.f32 %v1188, %v1190
  %v1193 = vsub.f32 %v1189, %v1191
  %s1194 = scalar_lea.vmem %s1, 32
  %v1195 = vld [vmem:[%s1194] sm:$0xff]
  %vm1196 = vcmask 31744
  %v1198 = vsel %vm1196, %v1195, 0
  %v1201 = vsel %vm1136, %v1180, 0
  %v1204 = vsel %vm1136, %v1181, 0
  %v1207 = vsel %vm1136, %v1186, 0
  %v1210 = vsel %vm1136, %v1187, 0
  %v1213 = vsel %vm1136, %v1192, 0
  %v1216 = vsel %vm1136, %v1193, 0
  %1218 = vmatprep.subr.mxu0 %v1204
  %1219 = vmatpush1.msra.mxu0 %v1201
  %1220 = vmatprep.subr.mxu0 0.0
  %1221 = vmatpush1.msra.mxu0 0.0
  %1222 = vmatprep.subr.mxu0 0.0
  %1223 = vmatpush1.msra.mxu0 0.0
  %1224 = vmatprep.subr.mxu0 0.0
  %1225 = vmatpush1.msra.mxu0 0.0
  %1226 = vmatprep.subr.mxu0 0.0
  %1227 = vmatpush1.msra.mxu0 0.0
  %1228 = vmatprep.subr.mxu0 0.0
  %1229 = vmatpush1.msra.mxu0 0.0
  %1230 = vmatprep.subr.mxu0 0.0
  %1231 = vmatpush1.msra.mxu0 0.0
  %1232 = vmatprep.subr.mxu0 0.0
  %1233 = vmatpush1.msra.mxu0 0.0
  %1234 = vmatprep.subr.mxu0 0.0
  %1235 = vmatpush1.msra.mxu0 0.0
  %1236 = vmatprep.subr.mxu0 0.0
  %1237 = vmatpush1.msra.mxu0 0.0
  %1238 = vmatprep.subr.mxu0 0.0
  %1239 = vmatpush1.msra.mxu0 0.0
  %1240 = vmatprep.subr.mxu0 0.0
  %1241 = vmatpush1.msra.mxu0 0.0
  %1242 = vmatprep.subr.mxu0 0.0
  %1243 = vmatpush1.msra.mxu0 0.0
  %1244 = vmatprep.subr.mxu0 0.0
  %1245 = vmatpush1.msra.mxu0 0.0
  %1246 = vmatprep.subr.mxu0 0.0
  %1247 = vmatpush1.msra.mxu0 0.0
  %1248 = vmatprep.subr.mxu0 0.0
  %1249 = vmatpush1.msra.mxu0 0.0
  %1250 = vmatprep.subr.mxu0 0.0
  %1251 = vmatpush1.msra.mxu0 0.0
  %1252 = vmatprep.subr.mxu0 0.0
  %1253 = vmatpush1.msra.mxu0 0.0
  %1254 = vmatprep.subr.mxu0 0.0
  %1255 = vmatpush1.msra.mxu0 0.0
  %1256 = vmatprep.subr.mxu0 0.0
  %1257 = vmatpush1.msra.mxu0 0.0
  %1258 = vmatprep.subr.mxu0 0.0
  %1259 = vmatpush1.msra.mxu0 0.0
  %1260 = vmatprep.subr.mxu0 0.0
  %1261 = vmatpush1.msra.mxu0 0.0
  %1262 = vmatprep.subr.mxu0 0.0
  %1263 = vmatpush1.msra.mxu0 0.0
  %1264 = vmatprep.subr.mxu0 0.0
  %1265 = vmatpush1.msra.mxu0 0.0
  %1266 = vmatprep.subr.mxu0 0.0
  %1267 = vmatpush1.msra.mxu0 0.0
  %1268 = vmatprep.subr.mxu0 0.0
  %1269 = vmatpush1.msra.mxu0 0.0
  %1270 = vmatprep.subr.mxu0 0.0
  %1271 = vmatpush1.msra.mxu0 0.0
  %1272 = vmatprep.subr.mxu0 0.0
  %1273 = vmatpush1.msra.mxu0 0.0
  %1274 = vmatprep.subr.mxu0 0.0
  %1275 = vmatpush1.msra.mxu0 0.0
  %1276 = vmatprep.subr.mxu0 0.0
  %1277 = vmatpush1.msra.mxu0 0.0
  %1278 = vmatprep.subr.mxu0 0.0
  %1279 = vmatpush1.msra.mxu0 0.0
  %1280 = vmatprep.subr.mxu0 0.0
  %1281 = vmatpush1.msra.mxu0 0.0
  %1282 = vmatprep.mubr.f32.mxu0 0.0
  %1283 = vmatmul.mubr.f32.gmra.mrb[0].mxu0 %v1198
  %v1284 = vpop.f32.mrb[0].mxu0
  %v1285 = vadd.f32 0.0, %v1284
  %v1286 = vpop.f32.mrb[0].mxu0
  %v1287 = vadd.f32 0.0, %v1286
  %1288 = vdwg.mxu0
  %1289 = vmatprep.subr.mxu0 %v1210
  %1290 = vmatpush1.msra.mxu0 %v1207
  %1291 = vmatprep.subr.mxu0 0.0
  %1292 = vmatpush1.msra.mxu0 0.0
  %1293 = vmatprep.subr.mxu0 0.0
  %1294 = vmatpush1.msra.mxu0 0.0
  %1295 = vmatprep.subr.mxu0 0.0
  %1296 = vmatpush1.msra.mxu0 0.0
  %1297 = vmatprep.subr.mxu0 0.0
  %1298 = vmatpush1.msra.mxu0 0.0
  %1299 = vmatprep.subr.mxu0 0.0
  %1300 = vmatpush1.msra.mxu0 0.0
  %1301 = vmatprep.subr.mxu0 0.0
  %1302 = vmatpush1.msra.mxu0 0.0
  %1303 = vmatprep.subr.mxu0 0.0
  %1304 = vmatpush1.msra.mxu0 0.0
  %1305 = vmatprep.subr.mxu0 0.0
  %1306 = vmatpush1.msra.mxu0 0.0
  %1307 = vmatprep.subr.mxu0 0.0
  %1308 = vmatpush1.msra.mxu0 0.0
  %1309 = vmatprep.subr.mxu0 0.0
  %1310 = vmatpush1.msra.mxu0 0.0
  %1311 = vmatprep.subr.mxu0 0.0
  %1312 = vmatpush1.msra.mxu0 0.0
  %1313 = vmatprep.subr.mxu0 0.0
  %1314 = vmatpush1.msra.mxu0 0.0
  %1315 = vmatprep.subr.mxu0 0.0
  %1316 = vmatpush1.msra.mxu0 0.0
  %1317 = vmatprep.subr.mxu0 0.0
  %1318 = vmatpush1.msra.mxu0 0.0
  %1319 = vmatprep.subr.mxu0 0.0
  %1320 = vmatpush1.msra.mxu0 0.0
  %1321 = vmatprep.subr.mxu0 0.0
  %1322 = vmatpush1.msra.mxu0 0.0
  %1323 = vmatprep.subr.mxu0 0.0
  %1324 = vmatpush1.msra.mxu0 0.0
  %1325 = vmatprep.subr.mxu0 0.0
  %1326 = vmatpush1.msra.mxu0 0.0
  %1327 = vmatprep.subr.mxu0 0.0
  %1328 = vmatpush1.msra.mxu0 0.0
  %1329 = vmatprep.subr.mxu0 0.0
  %1330 = vmatpush1.msra.mxu0 0.0
  %1331 = vmatprep.subr.mxu0 0.0
  %1332 = vmatpush1.msra.mxu0 0.0
  %1333 = vmatprep.subr.mxu0 0.0
  %1334 = vmatpush1.msra.mxu0 0.0
  %1335 = vmatprep.subr.mxu0 0.0
  %1336 = vmatpush1.msra.mxu0 0.0
  %1337 = vmatprep.subr.mxu0 0.0
  %1338 = vmatpush1.msra.mxu0 0.0
  %1339 = vmatprep.subr.mxu0 0.0
  %1340 = vmatpush1.msra.mxu0 0.0
  %1341 = vmatprep.subr.mxu0 0.0
  %1342 = vmatpush1.msra.mxu0 0.0
  %1343 = vmatprep.subr.mxu0 0.0
  %1344 = vmatpush1.msra.mxu0 0.0
  %1345 = vmatprep.subr.mxu0 0.0
  %1346 = vmatpush1.msra.mxu0 0.0
  %1347 = vmatprep.subr.mxu0 0.0
  %1348 = vmatpush1.msra.mxu0 0.0
  %1349 = vmatprep.subr.mxu0 0.0
  %1350 = vmatpush1.msra.mxu0 0.0
  %1351 = vmatprep.subr.mxu0 0.0
  %1352 = vmatpush1.msra.mxu0 0.0
  %1353 = vmatprep.mubr.f32.mxu0 0.0
  %1354 = vmatmul.mubr.f32.gmra.mrb[0].mxu0 %v1198
  %v1355 = vpop.f32.mrb[0].mxu0
  %v1356 = vadd.f32 0.0, %v1355
  %v1357 = vpop.f32.mrb[0].mxu0
  %v1358 = vadd.f32 0.0, %v1357
  %1359 = vdwg.mxu0
  %1360 = vmatprep.subr.mxu0 %v1216
  %1361 = vmatpush1.msra.mxu0 %v1213
  %1362 = vmatprep.subr.mxu0 0.0
  %1363 = vmatpush1.msra.mxu0 0.0
  %1364 = vmatprep.subr.mxu0 0.0
  %1365 = vmatpush1.msra.mxu0 0.0
  %1366 = vmatprep.subr.mxu0 0.0
  %1367 = vmatpush1.msra.mxu0 0.0
  %1368 = vmatprep.subr.mxu0 0.0
  %1369 = vmatpush1.msra.mxu0 0.0
  %1370 = vmatprep.subr.mxu0 0.0
  %1371 = vmatpush1.msra.mxu0 0.0
  %1372 = vmatprep.subr.mxu0 0.0
  %1373 = vmatpush1.msra.mxu0 0.0
  %1374 = vmatprep.subr.mxu0 0.0
  %1375 = vmatpush1.msra.mxu0 0.0
  %1376 = vmatprep.subr.mxu0 0.0
  %1377 = vmatpush1.msra.mxu0 0.0
  %1378 = vmatprep.subr.mxu0 0.0
  %1379 = vmatpush1.msra.mxu0 0.0
  %1380 = vmatprep.subr.mxu0 0.0
  %1381 = vmatpush1.msra.mxu0 0.0
  %1382 = vmatprep.subr.mxu0 0.0
  %1383 = vmatpush1.msra.mxu0 0.0
  %1384 = vmatprep.subr.mxu0 0.0
  %1385 = vmatpush1.msra.mxu0 0.0
  %1386 = vmatprep.subr.mxu0 0.0
  %1387 = vmatpush1.msra.mxu0 0.0
  %1388 = vmatprep.subr.mxu0 0.0
  %1389 = vmatpush1.msra.mxu0 0.0
  %1390 = vmatprep.subr.mxu0 0.0
  %1391 = vmatpush1.msra.mxu0 0.0
  %1392 = vmatprep.subr.mxu0 0.0
  %1393 = vmatpush1.msra.mxu0 0.0
  %1394 = vmatprep.subr.mxu0 0.0
  %1395 = vmatpush1.msra.mxu0 0.0
  %1396 = vmatprep.subr.mxu0 0.0
  %1397 = vmatpush1.msra.mxu0 0.0
  %1398 = vmatprep.subr.mxu0 0.0
  %1399 = vmatpush1.msra.mxu0 0.0
  %1400 = vmatprep.subr.mxu0 0.0
  %1401 = vmatpush1.msra.mxu0 0.0
  %1402 = vmatprep.subr.mxu0 0.0
  %1403 = vmatpush1.msra.mxu0 0.0
  %1404 = vmatprep.subr.mxu0 0.0
  %1405 = vmatpush1.msra.mxu0 0.0
  %1406 = vmatprep.subr.mxu0 0.0
  %1407 = vmatpush1.msra.mxu0 0.0
  %1408 = vmatprep.subr.mxu0 0.0
  %1409 = vmatpush1.msra.mxu0 0.0
  %1410 = vmatprep.subr.mxu0 0.0
  %1411 = vmatpush1.msra.mxu0 0.0
  %1412 = vmatprep.subr.mxu0 0.0
  %1413 = vmatpush1.msra.mxu0 0.0
  %1414 = vmatprep.subr.mxu0 0.0
  %1415 = vmatpush1.msra.mxu0 0.0
  %1416 = vmatprep.subr.mxu0 0.0
  %1417 = vmatpush1.msra.mxu0 0.0
  %1418 = vmatprep.subr.mxu0 0.0
  %1419 = vmatpush1.msra.mxu0 0.0
  %1420 = vmatprep.subr.mxu0 0.0
  %1421 = vmatpush1.msra.mxu0 0.0
  %1422 = vmatprep.subr.mxu0 0.0
  %1423 = vmatpush1.msra.mxu0 0.0
  %1424 = vmatprep.mubr.f32.mxu0 0.0
  %1425 = vmatmul.mubr.f32.gmra.mrb[0].mxu0 %v1198
  %v1426 = vpop.f32.mrb[0].mxu0
  %v1427 = vadd.f32 0.0, %v1426
  %v1428 = vpop.f32.mrb[0].mxu0
  %v1429 = vadd.f32 0.0, %v1428
  %1430 = vdwg.mxu0
  %v1431 = vmul.f32 %v1285, %v1285
  %v1432 = vmul.f32 %v1287, %v1287
  %v1433 = vmul.f32 %v1356, %v1356
  %v1434 = vmul.f32 %v1358, %v1358
  %v1435 = vmul.f32 %v1427, %v1427
  %v1436 = vmul.f32 %v1429, %v1429
  %v1437 = vadd.f32 %v1431, %v1433
  %v1438 = vadd.f32 %v1432, %v1434
  %v1439 = vadd.f32 %v1437, %v1435
  %v1440 = vadd.f32 %v1438, %v1436
  %v1447 = vrot.slane %v1285, 4
  %v1448 = vrot.slane %v1287, 4
  %v1449 = vrot.slane %v1356, 4
  %v1450 = vrot.slane %v1358, 4
  %v1451 = vrot.slane %v1427, 4
  %v1452 = vrot.slane %v1429, 4
  %v1459 = vmul.f32 %v1285, %v1447
  %v1460 = vmul.f32 %v1287, %v1448
  %v1461 = vmul.f32 %v1356, %v1449
  %v1462 = vmul.f32 %v1358, %v1450
  %v1463 = vmul.f32 %v1427, %v1451
  %v1464 = vmul.f32 %v1429, %v1452
  %v1465 = vadd.f32 %v1459, %v1461
  %v1466 = vadd.f32 %v1460, %v1462
  %v1467 = vadd.f32 %v1465, %v1463
  %v1468 = vadd.f32 %v1466, %v1464
  %v1469 = vrsqrt.pop %v1439
  %v1470 = vmul.f32 %v1439, %v1469
  %vm1471 = vcmp.eq.f32.partialorder %v1439, inf
  %v1472 = vsel %vm1471, %v1439, %v1470
  %vm1473 = vcmp.eq.f32.partialorder %v1439, 0.0
  %v1474 = vand.u32 %v1439, 2147483648
  %v1475 = vsel %vm1473, %v1474, %v1472
  %v1476 = vrsqrt.pop %v1440
  %v1477 = vmul.f32 %v1440, %v1476
  %vm1478 = vcmp.eq.f32.partialorder %v1440, inf
  %v1479 = vsel %vm1478, %v1440, %v1477
  %vm1480 = vcmp.eq.f32.partialorder %v1440, 0.0
  %v1481 = vand.u32 %v1440, 2147483648
  %v1482 = vsel %vm1480, %v1481, %v1479
  %v1483 = vadd.f32 %v1475, 1e-06
  %v1484 = vadd.f32 %v1482, 1e-06
  %v1485 = vmul.f32 %v1483, %v1483
  %v1486 = vmul.f32 %v1484, %v1484
  %v1487 = vsel %vm1136, %v1483, 0.0
  %v1488 = vsel %vm1136, %v1484, 0.0
  %v1489 = vadd.f32 %v1487, %v1488
  %1490 = vadd.xlane.f32.xlu0 %v1489
  %v1491 = vpop.xlane.xlu0 %1490
  %v1492 = vmul.f32 %v1491, %v817
  %v1493 = vsel %vm1136, %v1485, 0.0
  %v1494 = vsel %vm1136, %v1486, 0.0
  %v1495 = vadd.f32 %v1493, %v1494
  %1496 = vadd.xlane.f32.xlu0 %v1495
  %v1497 = vpop.xlane.xlu0 %1496
  %v1498 = vmul.f32 %v1497, %v817
  %v1499 = vmul.f32 %v1492, %v1492
  %v1500 = vsub.f32 %v1498, %v1499
  %v1501 = vsub.f32 %v1483, %v1492
  %v1502 = vsub.f32 %v1484, %v1492
  %v1503 = vadd.f32 %v1500, 1e-05
  %v1504 = vmul.f32 %v1503, %v1485
  %v1505 = vmul.f32 %v1503, %v1486
  %v1506 = vrsqrt.pop %v1504
  %v1507 = vrsqrt.pop %v1505
  %v1508 = vmul.f32 %v1501, %v1506
  %v1509 = vmul.f32 %v1502, %v1507
  %v1510 = vmul.f32 %v1467, %v1508
  %v1511 = vmul.f32 %v1468, %v1509
  %v1512 = vmin.f32 %v1510, 0.0
  %v1513 = vmin.f32 %v1511, 0.0
  %v1514 = vadd.f32 %v1439, 1e-06
  %v1515 = vadd.f32 %v1440, 1e-06
  %v1516 = vrcp.pop %v1514
  %v1517 = vrcp.pop %v1515
  %v1520 = vrot.slane %v1516, 4
  %v1521 = vrot.slane %v1517, 4
  %v1524 = vmul.f32 %v1512, %v1520
  %v1525 = vmul.f32 %v1513, %v1521
  %v1526 = vmul.f32 %v1285, %v1508
  %v1527 = vmul.f32 %v1287, %v1509
  %v1528 = vmul.f32 %v1524, %v1447
  %v1529 = vmul.f32 %v1525, %v1448
  %v1530 = vsub.f32 %v1526, %v1528
  %v1531 = vsub.f32 %v1527, %v1529
  %v1532 = vmul.f32 %v1356, %v1508
  %v1533 = vmul.f32 %v1358, %v1509
  %v1534 = vmul.f32 %v1524, %v1449
  %v1535 = vmul.f32 %v1525, %v1450
  %v1536 = vsub.f32 %v1532, %v1534
  %v1537 = vsub.f32 %v1533, %v1535
  %v1538 = vmul.f32 %v1427, %v1508
  %v1539 = vmul.f32 %v1429, %v1509
  %v1540 = vmul.f32 %v1524, %v1451
  %v1541 = vmul.f32 %v1525, %v1452
  %v1542 = vsub.f32 %v1538, %v1540
  %v1543 = vsub.f32 %v1539, %v1541
  %s1544 = scalar_lea.vmem %s1, 48
  %v1545 = vld [vmem:[%s1544] sm:$0xff]
  %v1546 = vld [vmem:[%s2] sm:$0xff]
  %v1547 = vld [vmem:[%s2 + $0x8] sm:$0xff]
  %v1548 = vld [vmem:[%s2 + $0x10] sm:$0xff]
  %v1549 = vld [vmem:[%s2 + $0x18] sm:$0xff]
  %v1550 = vld [vmem:[%s2 + $0x20] sm:$0xff]
  %v1551 = vld [vmem:[%s2 + $0x28] sm:$0xff]
  %v1552 = vld [vmem:[%s2 + $0x30] sm:$0xff]
  %v1553 = vld [vmem:[%s2 + $0x38] sm:$0xff]
  %v1554 = vld [vmem:[%s2 + $0x40] sm:$0xff]
  %v1555 = vld [vmem:[%s2 + $0x48] sm:$0xff]
  %v1556 = vld [vmem:[%s2 + $0x50] sm:$0xff]
  %v1557 = vld [vmem:[%s2 + $0x58] sm:$0xff]
  %v1558 = vld [vmem:[%s2 + $0x60] sm:$0xff]
  %v1559 = vld [vmem:[%s2 + $0x68] sm:$0xff]
  %v1560 = vld [vmem:[%s2 + $0x70] sm:$0xff]
  %v1561 = vld [vmem:[%s2 + $0x78] sm:$0xff]
  %v1562 = vld [vmem:[%s2 + $0x80] sm:$0xff]
  %v1563 = vld [vmem:[%s2 + $0x88] sm:$0xff]
  %v1564 = vld [vmem:[%s2 + $0x90] sm:$0xff]
  %v1565 = vld [vmem:[%s2 + $0x98] sm:$0xff]
  %v1566 = vld [vmem:[%s2 + $0xa0] sm:$0xff]
  %v1567 = vld [vmem:[%s2 + $0xa8] sm:$0xff]
  %v1568 = vld [vmem:[%s2 + $0xb0] sm:$0xff]
  %v1569 = vld [vmem:[%s2 + $0xb8] sm:$0xff]
  %v1570 = vld [vmem:[%s2 + $0xc0] sm:$0xff]
  %v1571 = vld [vmem:[%s2 + $0xc8] sm:$0xff]
  %v1572 = vld [vmem:[%s2 + $0xd0] sm:$0xff]
  %v1573 = vld [vmem:[%s2 + $0xd8] sm:$0xff]
  %v1574 = vld [vmem:[%s2 + $0xe0] sm:$0xff]
  %v1575 = vld [vmem:[%s2 + $0xe8] sm:$0xff]
  %v1576 = vld [vmem:[%s2 + $0xf0] sm:$0xff]
  %v1577 = vld [vmem:[%s2 + $0xf8] sm:$0xff]
  %v1578 = vld [vmem:[%s2 + $0x100] sm:$0xff]
  %v1579 = vld [vmem:[%s2 + $0x108] sm:$0xff]
  %v1580 = vld [vmem:[%s2 + $0x110] sm:$0xff]
  %v1581 = vld [vmem:[%s2 + $0x118] sm:$0xff]
  %v1582 = vld [vmem:[%s2 + $0x120] sm:$0xff]
  %v1583 = vld [vmem:[%s2 + $0x128] sm:$0xff]
  %v1584 = vld [vmem:[%s2 + $0x130] sm:$0xff]
  %v1585 = vld [vmem:[%s2 + $0x138] sm:$0xff]
  %v1586 = vld [vmem:[%s2 + $0x140] sm:$0xff]
  %v1587 = vld [vmem:[%s2 + $0x148] sm:$0xff]
  %v1588 = vld [vmem:[%s2 + $0x150] sm:$0xff]
  %v1589 = vld [vmem:[%s2 + $0x158] sm:$0xff]
  %v1590 = vld [vmem:[%s2 + $0x160] sm:$0xff]
  %v1591 = vld [vmem:[%s2 + $0x168] sm:$0xff]
  %v1592 = vld [vmem:[%s2 + $0x170] sm:$0xff]
  %v1593 = vld [vmem:[%s2 + $0x178] sm:$0xff]
  %v1594 = vld [vmem:[%s2 + $0x180] sm:$0xff]
  %v1595 = vld [vmem:[%s2 + $0x188] sm:$0xff]
  %v1596 = vld [vmem:[%s2 + $0x190] sm:$0xff]
  %v1597 = vld [vmem:[%s2 + $0x198] sm:$0xff]
  %v1598 = vld [vmem:[%s2 + $0x1a0] sm:$0xff]
  %v1599 = vld [vmem:[%s2 + $0x1a8] sm:$0xff]
  %v1600 = vld [vmem:[%s2 + $0x1b0] sm:$0xff]
  %v1601 = vld [vmem:[%s2 + $0x1b8] sm:$0xff]
  %v1602 = vld [vmem:[%s2 + $0x1c0] sm:$0xff]
  %v1603 = vld [vmem:[%s2 + $0x1c8] sm:$0xff]
  %v1604 = vld [vmem:[%s2 + $0x1d0] sm:$0xff]
  %v1605 = vld [vmem:[%s2 + $0x1d8] sm:$0xff]
  %v1606 = vld [vmem:[%s2 + $0x1e0] sm:$0xff]
  %v1607 = vld [vmem:[%s2 + $0x1e8] sm:$0xff]
  %v1608 = vld [vmem:[%s2 + $0x1f0] sm:$0xff]
  %v1609 = vld [vmem:[%s2 + $0x1f8] sm:$0xff]
  %v1610 = vld [vmem:[%s2 + $0x200] sm:$0xff]
  %v1611 = vld [vmem:[%s2 + $0x208] sm:$0xff]
  %v1612 = vld [vmem:[%s2 + $0x210] sm:$0xff]
  %v1613 = vld [vmem:[%s2 + $0x218] sm:$0xff]
  %v1614 = vld [vmem:[%s2 + $0x220] sm:$0xff]
  %v1615 = vld [vmem:[%s2 + $0x228] sm:$0xff]
  %v1616 = vld [vmem:[%s2 + $0x230] sm:$0xff]
  %v1617 = vld [vmem:[%s2 + $0x238] sm:$0xff]
  %v1618 = vld [vmem:[%s2 + $0x240] sm:$0xff]
  %v1619 = vld [vmem:[%s2 + $0x248] sm:$0xff]
  %v1620 = vld [vmem:[%s2 + $0x250] sm:$0xff]
  %v1621 = vld [vmem:[%s2 + $0x258] sm:$0xff]
  %v1622 = vld [vmem:[%s2 + $0x260] sm:$0xff]
  %v1623 = vld [vmem:[%s2 + $0x268] sm:$0xff]
  %v1624 = vld [vmem:[%s2 + $0x270] sm:$0xff]
  %v1625 = vld [vmem:[%s2 + $0x278] sm:$0xff]
  %v1626 = vld [vmem:[%s2 + $0x280] sm:$0xff]
  %v1627 = vld [vmem:[%s2 + $0x288] sm:$0xff]
  %v1628 = vld [vmem:[%s2 + $0x290] sm:$0xff]
  %v1629 = vld [vmem:[%s2 + $0x298] sm:$0xff]
  %v1630 = vld [vmem:[%s2 + $0x2a0] sm:$0xff]
  %v1631 = vld [vmem:[%s2 + $0x2a8] sm:$0xff]
  %v1632 = vld [vmem:[%s2 + $0x2b0] sm:$0xff]
  %v1633 = vld [vmem:[%s2 + $0x2b8] sm:$0xff]
  %v1634 = vld [vmem:[%s2 + $0x2c0] sm:$0xff]
  %v1635 = vld [vmem:[%s2 + $0x2c8] sm:$0xff]
  %v1636 = vld [vmem:[%s2 + $0x2d0] sm:$0xff]
  %v1637 = vld [vmem:[%s2 + $0x2d8] sm:$0xff]
  %v1638 = vld [vmem:[%s2 + $0x2e0] sm:$0xff]
  %v1639 = vld [vmem:[%s2 + $0x2e8] sm:$0xff]
  %v1640 = vld [vmem:[%s2 + $0x2f0] sm:$0xff]
  %v1641 = vld [vmem:[%s2 + $0x2f8] sm:$0xff]
  %1642 = vmatprep.subr.mxu0 0.0
  %1643 = vmatpush1.msra.mxu0 %v1546
  %1644 = vmatprep.subr.mxu0 0.0
  %1645 = vmatpush1.msra.mxu0 %v1547
  %1646 = vmatprep.subr.mxu0 0.0
  %1647 = vmatpush1.msra.mxu0 %v1548
  %1648 = vmatprep.subr.mxu0 0.0
  %1649 = vmatpush1.msra.mxu0 %v1549
  %1650 = vmatprep.subr.mxu0 0.0
  %1651 = vmatpush1.msra.mxu0 %v1550
  %1652 = vmatprep.subr.mxu0 0.0
  %1653 = vmatpush1.msra.mxu0 %v1551
  %1654 = vmatprep.subr.mxu0 0.0
  %1655 = vmatpush1.msra.mxu0 %v1552
  %1656 = vmatprep.subr.mxu0 0.0
  %1657 = vmatpush1.msra.mxu0 %v1553
  %1658 = vmatprep.subr.mxu0 0.0
  %1659 = vmatpush1.msra.mxu0 %v1554
  %1660 = vmatprep.subr.mxu0 0.0
  %1661 = vmatpush1.msra.mxu0 %v1555
  %1662 = vmatprep.subr.mxu0 0.0
  %1663 = vmatpush1.msra.mxu0 %v1556
  %1664 = vmatprep.subr.mxu0 0.0
  %1665 = vmatpush1.msra.mxu0 %v1557
  %1666 = vmatprep.subr.mxu0 0.0
  %1667 = vmatpush1.msra.mxu0 %v1558
  %1668 = vmatprep.subr.mxu0 0.0
  %1669 = vmatpush1.msra.mxu0 %v1559
  %1670 = vmatprep.subr.mxu0 0.0
  %1671 = vmatpush1.msra.mxu0 %v1560
  %1672 = vmatprep.subr.mxu0 0.0
  %1673 = vmatpush1.msra.mxu0 %v1561
  %1674 = vmatprep.subr.mxu0 0.0
  %1675 = vmatpush1.msra.mxu0 %v1562
  %1676 = vmatprep.subr.mxu0 0.0
  %1677 = vmatpush1.msra.mxu0 %v1563
  %1678 = vmatprep.subr.mxu0 0.0
  %1679 = vmatpush1.msra.mxu0 %v1564
  %1680 = vmatprep.subr.mxu0 0.0
  %1681 = vmatpush1.msra.mxu0 %v1565
  %1682 = vmatprep.subr.mxu0 0.0
  %1683 = vmatpush1.msra.mxu0 %v1566
  %1684 = vmatprep.subr.mxu0 0.0
  %1685 = vmatpush1.msra.mxu0 %v1567
  %1686 = vmatprep.subr.mxu0 0.0
  %1687 = vmatpush1.msra.mxu0 %v1568
  %1688 = vmatprep.subr.mxu0 0.0
  %1689 = vmatpush1.msra.mxu0 %v1569
  %1690 = vmatprep.subr.mxu0 0.0
  %1691 = vmatpush1.msra.mxu0 %v1570
  %1692 = vmatprep.subr.mxu0 0.0
  %1693 = vmatpush1.msra.mxu0 %v1571
  %1694 = vmatprep.subr.mxu0 0.0
  %1695 = vmatpush1.msra.mxu0 %v1572
  %1696 = vmatprep.subr.mxu0 0.0
  %1697 = vmatpush1.msra.mxu0 %v1573
  %1698 = vmatprep.subr.mxu0 0.0
  %1699 = vmatpush1.msra.mxu0 %v1574
  %1700 = vmatprep.subr.mxu0 0.0
  %1701 = vmatpush1.msra.mxu0 %v1575
  %1702 = vmatprep.subr.mxu0 0.0
  %1703 = vmatpush1.msra.mxu0 %v1576
  %1704 = vmatprep.subr.mxu0 0.0
  %1705 = vmatpush1.msra.mxu0 %v1577
  %1706 = vmatprep.mubr.f32.mxu0 %v1531
  %1707 = vmatmul.mubr.f32.gmra.mrb[0].mxu0 %v1530
  %v1708 = vpop.f32.mrb[0].mxu0
  %v1709 = vadd.f32 0.0, %v1708
  %v1710 = vpop.f32.mrb[0].mxu0
  %1711 = vdwg.mxu0
  %1712 = vmatprep.subr.mxu0 0.0
  %1713 = vmatpush1.msra.mxu0 %v1578
  %1714 = vmatprep.subr.mxu0 0.0
  %1715 = vmatpush1.msra.mxu0 %v1579
  %1716 = vmatprep.subr.mxu0 0.0
  %1717 = vmatpush1.msra.mxu0 %v1580
  %1718 = vmatprep.subr.mxu0 0.0
  %1719 = vmatpush1.msra.mxu0 %v1581
  %1720 = vmatprep.subr.mxu0 0.0
  %1721 = vmatpush1.msra.mxu0 %v1582
  %1722 = vmatprep.subr.mxu0 0.0
  %1723 = vmatpush1.msra.mxu0 %v1583
  %1724 = vmatprep.subr.mxu0 0.0
  %1725 = vmatpush1.msra.mxu0 %v1584
  %1726 = vmatprep.subr.mxu0 0.0
  %1727 = vmatpush1.msra.mxu0 %v1585
  %1728 = vmatprep.subr.mxu0 0.0
  %1729 = vmatpush1.msra.mxu0 %v1586
  %1730 = vmatprep.subr.mxu0 0.0
  %1731 = vmatpush1.msra.mxu0 %v1587
  %1732 = vmatprep.subr.mxu0 0.0
  %1733 = vmatpush1.msra.mxu0 %v1588
  %1734 = vmatprep.subr.mxu0 0.0
  %1735 = vmatpush1.msra.mxu0 %v1589
  %1736 = vmatprep.subr.mxu0 0.0
  %1737 = vmatpush1.msra.mxu0 %v1590
  %1738 = vmatprep.subr.mxu0 0.0
  %1739 = vmatpush1.msra.mxu0 %v1591
  %1740 = vmatprep.subr.mxu0 0.0
  %1741 = vmatpush1.msra.mxu0 %v1592
  %1742 = vmatprep.subr.mxu0 0.0
  %1743 = vmatpush1.msra.mxu0 %v1593
  %1744 = vmatprep.subr.mxu0 0.0
  %1745 = vmatpush1.msra.mxu0 %v1594
  %1746 = vmatprep.subr.mxu0 0.0
  %1747 = vmatpush1.msra.mxu0 %v1595
  %1748 = vmatprep.subr.mxu0 0.0
  %1749 = vmatpush1.msra.mxu0 %v1596
  %1750 = vmatprep.subr.mxu0 0.0
  %1751 = vmatpush1.msra.mxu0 %v1597
  %1752 = vmatprep.subr.mxu0 0.0
  %1753 = vmatpush1.msra.mxu0 %v1598
  %1754 = vmatprep.subr.mxu0 0.0
  %1755 = vmatpush1.msra.mxu0 %v1599
  %1756 = vmatprep.subr.mxu0 0.0
  %1757 = vmatpush1.msra.mxu0 %v1600
  %1758 = vmatprep.subr.mxu0 0.0
  %1759 = vmatpush1.msra.mxu0 %v1601
  %1760 = vmatprep.subr.mxu0 0.0
  %1761 = vmatpush1.msra.mxu0 %v1602
  %1762 = vmatprep.subr.mxu0 0.0
  %1763 = vmatpush1.msra.mxu0 %v1603
  %1764 = vmatprep.subr.mxu0 0.0
  %1765 = vmatpush1.msra.mxu0 %v1604
  %1766 = vmatprep.subr.mxu0 0.0
  %1767 = vmatpush1.msra.mxu0 %v1605
  %1768 = vmatprep.subr.mxu0 0.0
  %1769 = vmatpush1.msra.mxu0 %v1606
  %1770 = vmatprep.subr.mxu0 0.0
  %1771 = vmatpush1.msra.mxu0 %v1607
  %1772 = vmatprep.subr.mxu0 0.0
  %1773 = vmatpush1.msra.mxu0 %v1608
  %1774 = vmatprep.subr.mxu0 0.0
  %1775 = vmatpush1.msra.mxu0 %v1609
  %1776 = vmatprep.mubr.f32.mxu0 %v1537
  %1777 = vmatmul.mubr.f32.gmra.mrb[0].mxu0 %v1536
  %v1778 = vpop.f32.mrb[0].mxu0
  %v1779 = vadd.f32 %v1709, %v1778
  %v1780 = vpop.f32.mrb[0].mxu0
  %1781 = vdwg.mxu0
  %1782 = vmatprep.subr.mxu0 0.0
  %1783 = vmatpush1.msra.mxu0 %v1610
  %1784 = vmatprep.subr.mxu0 0.0
  %1785 = vmatpush1.msra.mxu0 %v1611
  %1786 = vmatprep.subr.mxu0 0.0
  %1787 = vmatpush1.msra.mxu0 %v1612
  %1788 = vmatprep.subr.mxu0 0.0
  %1789 = vmatpush1.msra.mxu0 %v1613
  %1790 = vmatprep.subr.mxu0 0.0
  %1791 = vmatpush1.msra.mxu0 %v1614
  %1792 = vmatprep.subr.mxu0 0.0
  %1793 = vmatpush1.msra.mxu0 %v1615
  %1794 = vmatprep.subr.mxu0 0.0
  %1795 = vmatpush1.msra.mxu0 %v1616
  %1796 = vmatprep.subr.mxu0 0.0
  %1797 = vmatpush1.msra.mxu0 %v1617
  %1798 = vmatprep.subr.mxu0 0.0
  %1799 = vmatpush1.msra.mxu0 %v1618
  %1800 = vmatprep.subr.mxu0 0.0
  %1801 = vmatpush1.msra.mxu0 %v1619
  %1802 = vmatprep.subr.mxu0 0.0
  %1803 = vmatpush1.msra.mxu0 %v1620
  %1804 = vmatprep.subr.mxu0 0.0
  %1805 = vmatpush1.msra.mxu0 %v1621
  %1806 = vmatprep.subr.mxu0 0.0
  %1807 = vmatpush1.msra.mxu0 %v1622
  %1808 = vmatprep.subr.mxu0 0.0
  %1809 = vmatpush1.msra.mxu0 %v1623
  %1810 = vmatprep.subr.mxu0 0.0
  %1811 = vmatpush1.msra.mxu0 %v1624
  %1812 = vmatprep.subr.mxu0 0.0
  %1813 = vmatpush1.msra.mxu0 %v1625
  %1814 = vmatprep.subr.mxu0 0.0
  %1815 = vmatpush1.msra.mxu0 %v1626
  %1816 = vmatprep.subr.mxu0 0.0
  %1817 = vmatpush1.msra.mxu0 %v1627
  %1818 = vmatprep.subr.mxu0 0.0
  %1819 = vmatpush1.msra.mxu0 %v1628
  %1820 = vmatprep.subr.mxu0 0.0
  %1821 = vmatpush1.msra.mxu0 %v1629
  %1822 = vmatprep.subr.mxu0 0.0
  %1823 = vmatpush1.msra.mxu0 %v1630
  %1824 = vmatprep.subr.mxu0 0.0
  %1825 = vmatpush1.msra.mxu0 %v1631
  %1826 = vmatprep.subr.mxu0 0.0
  %1827 = vmatpush1.msra.mxu0 %v1632
  %1828 = vmatprep.subr.mxu0 0.0
  %1829 = vmatpush1.msra.mxu0 %v1633
  %1830 = vmatprep.subr.mxu0 0.0
  %1831 = vmatpush1.msra.mxu0 %v1634
  %1832 = vmatprep.subr.mxu0 0.0
  %1833 = vmatpush1.msra.mxu0 %v1635
  %1834 = vmatprep.subr.mxu0 0.0
  %1835 = vmatpush1.msra.mxu0 %v1636
  %1836 = vmatprep.subr.mxu0 0.0
  %1837 = vmatpush1.msra.mxu0 %v1637
  %1838 = vmatprep.subr.mxu0 0.0
  %1839 = vmatpush1.msra.mxu0 %v1638
  %1840 = vmatprep.subr.mxu0 0.0
  %1841 = vmatpush1.msra.mxu0 %v1639
  %1842 = vmatprep.subr.mxu0 0.0
  %1843 = vmatpush1.msra.mxu0 %v1640
  %1844 = vmatprep.subr.mxu0 0.0
  %1845 = vmatpush1.msra.mxu0 %v1641
  %1846 = vmatprep.mubr.f32.mxu0 %v1543
  %1847 = vmatmul.mubr.f32.gmra.mrb[0].mxu0 %v1542
  %v1848 = vpop.f32.mrb[0].mxu0
  %v1849 = vadd.f32 %v1779, %v1848
  %v1850 = vpop.f32.mrb[0].mxu0
  %1851 = vdwg.mxu0
  %v1853 = vsel %vm1196, %v1545, 0
  %v1856 = vsel %vm1136, %v1849, 0
  %1858 = vmatprep.subr.mxu0 0.0
  %1859 = vmatpush1.msra.mxu0 %v1856
  %1860 = vmatprep.subr.mxu0 0.0
  %1861 = vmatpush1.msra.mxu0 0.0
  %1862 = vmatprep.subr.mxu0 0.0
  %1863 = vmatpush1.msra.mxu0 0.0
  %1864 = vmatprep.subr.mxu0 0.0
  %1865 = vmatpush1.msra.mxu0 0.0
  %1866 = vmatprep.subr.mxu0 0.0
  %1867 = vmatpush1.msra.mxu0 0.0
  %1868 = vmatprep.subr.mxu0 0.0
  %1869 = vmatpush1.msra.mxu0 0.0
  %1870 = vmatprep.subr.mxu0 0.0
  %1871 = vmatpush1.msra.mxu0 0.0
  %1872 = vmatprep.subr.mxu0 0.0
  %1873 = vmatpush1.msra.mxu0 0.0
  %1874 = vmatprep.subr.mxu0 0.0
  %1875 = vmatpush1.msra.mxu0 0.0
  %1876 = vmatprep.subr.mxu0 0.0
  %1877 = vmatpush1.msra.mxu0 0.0
  %1878 = vmatprep.subr.mxu0 0.0
  %1879 = vmatpush1.msra.mxu0 0.0
  %1880 = vmatprep.subr.mxu0 0.0
  %1881 = vmatpush1.msra.mxu0 0.0
  %1882 = vmatprep.subr.mxu0 0.0
  %1883 = vmatpush1.msra.mxu0 0.0
  %1884 = vmatprep.subr.mxu0 0.0
  %1885 = vmatpush1.msra.mxu0 0.0
  %1886 = vmatprep.subr.mxu0 0.0
  %1887 = vmatpush1.msra.mxu0 0.0
  %1888 = vmatprep.subr.mxu0 0.0
  %1889 = vmatpush1.msra.mxu0 0.0
  %1890 = vmatprep.subr.mxu0 0.0
  %1891 = vmatpush1.msra.mxu0 0.0
  %1892 = vmatprep.subr.mxu0 0.0
  %1893 = vmatpush1.msra.mxu0 0.0
  %1894 = vmatprep.subr.mxu0 0.0
  %1895 = vmatpush1.msra.mxu0 0.0
  %1896 = vmatprep.subr.mxu0 0.0
  %1897 = vmatpush1.msra.mxu0 0.0
  %1898 = vmatprep.subr.mxu0 0.0
  %1899 = vmatpush1.msra.mxu0 0.0
  %1900 = vmatprep.subr.mxu0 0.0
  %1901 = vmatpush1.msra.mxu0 0.0
  %1902 = vmatprep.subr.mxu0 0.0
  %1903 = vmatpush1.msra.mxu0 0.0
  %1904 = vmatprep.subr.mxu0 0.0
  %1905 = vmatpush1.msra.mxu0 0.0
  %1906 = vmatprep.subr.mxu0 0.0
  %1907 = vmatpush1.msra.mxu0 0.0
  %1908 = vmatprep.subr.mxu0 0.0
  %1909 = vmatpush1.msra.mxu0 0.0
  %1910 = vmatprep.subr.mxu0 0.0
  %1911 = vmatpush1.msra.mxu0 0.0
  %1912 = vmatprep.subr.mxu0 0.0
  %1913 = vmatpush1.msra.mxu0 0.0
  %1914 = vmatprep.subr.mxu0 0.0
  %1915 = vmatpush1.msra.mxu0 0.0
  %1916 = vmatprep.subr.mxu0 0.0
  %1917 = vmatpush1.msra.mxu0 0.0
  %1918 = vmatprep.subr.mxu0 0.0
  %1919 = vmatpush1.msra.mxu0 0.0
  %1920 = vmatprep.subr.mxu0 0.0
  %1921 = vmatpush1.msra.mxu0 0.0
  %1922 = vmatprep.mubr.f32.mxu0 0.0
  %1923 = vmatmul.mubr.f32.gmra.mrb[0].mxu0 %v1853
  %v1924 = vpop.f32.mrb[0].mxu0
  %v1925 = vadd.f32 0.0, %v1924
  %v1926 = vpop.f32.mrb[0].mxu0
  %1927 = vdwg.mxu0
  %vm1928 = vcmask 43008
  %1929 = vst.msk [vmem:[%s3] sm:$0x7] %vm1928, %v1925
  // Predicated region
  $region232: #{complex_rot_forward.1} parent=0 // pred_check
    _
  $region233: #{complex_rot_forward.1} parent=0 // pred_check_branch
    %1931 = sbr.rel (0) target = $region235
  $region234: #{complex_rot_forward.1} parent=0 // pred_region
    _
  $region235: #{complex_rot_forward.1} parent=0 // pred_fallthru
    _
  // Predicated region
  $region236: #{complex_rot_forward.1} parent=0 // pred_check
    _
  $region237: #{complex_rot_forward.1} parent=0 // pred_check_branch
    %1933 = sbr.rel (0) target = $region239
  $region238: #{complex_rot_forward.1} parent=0 // pred_region
    _
  $region239: #{complex_rot_forward.1} parent=0 // pred_fallthru
    _
  %1934 = vsyncmov [#allocation3]
  %s1935 = vpop.sfrf %1934
  %p1936 = scmp.eq.s32.totalorder %s1935, 0
  %p1937 = pneg %p1936
  %1939 = shalt.err (%p1937)
  %s1940 = scalar_lea.sflag [#allocation3], 1
  %1941 = vsyncmov %s1940
  %s1942 = vpop.sfrf %1941
  %p1943 = scmp.eq.s32.totalorder %s1942, 0
  %p1944 = pneg %p1943
  %1946 = shalt.err (%p1944)
  %s1947 = scalar_lea.sflag [#allocation3], 2
  %1948 = vsyncmov %s1947
  %s1949 = vpop.sfrf %1948
  %p1950 = scmp.eq.s32.totalorder %s1949, 0
  %p1951 = pneg %p1950
  %1953 = shalt.err (%p1951)
  %s1954 = scalar_lea.sflag [#allocation3], 3
  %1955 = vsyncmov %s1954
  %s1956 = vpop.sfrf %1955
  %p1957 = scmp.eq.s32.totalorder %s1956, 0
  %p1958 = pneg %p1957
  %1960 = shalt.err (%p1958)
  %s1961 = scalar_lea.sflag [#allocation3], 4
  %1962 = vsyncmov %s1961
  %s1963 = vpop.sfrf %1962
  %p1964 = scmp.eq.s32.totalorder %s1963, 0
  %p1965 = pneg %p1964
  %1967 = shalt.err (%p1965)
  %s1968 = scalar_lea.sflag [#allocation3], 5
  %1969 = vsyncmov %s1968
  %s1970 = vpop.sfrf %1969
  %p1971 = scmp.eq.s32.totalorder %s1970, 0
  %p1972 = pneg %p1971
  %1974 = shalt.err (%p1972)

</llo_original>
